<compile_context>
chip_gen: v7x
topology: tpu7x:2x2x1
jax: 0.10.0
libtpu: 0.0.40
codegen_flags: <defaults>
</compile_context>

<pallas_src>
import jax
import jax.numpy as jnp
from jax.experimental import pallas as pl
from jax.experimental.pallas import tpu as pltpu


def _attend_kernel(xq_ref, xk_ref, wq_ref, wm_ref, wv_ref, r_ref, v_ref, q_scr_ref):
    # xq_ref  : (C, TQ)   query-position slab of x (positions on lanes), resident over tk
    # xk_ref  : (C, HW)   key-frame slab of x, streams with tk (innermost axis)
    # wq_ref  : (Ch, C)   query weight, pre-scaled by 1/sqrt(Ch)
    # wm_ref  : (Ch, C)   memory weight
    # wv_ref  : (Ch, C)   value weight
    # r_ref   : (Ch, TQ)  attended output tile (lane dense, final layout)
    # v_ref   : (Ch, HW)  value output for this key frame (lane dense, final layout)
    # q_scr_ref: (Ch, TQ) cached Q projection (persists across the tk loop)
    tk = pl.program_id(2)
    op_dtype = q_scr_ref.dtype

    # Q projection (attention scale already folded into wq): computed once per
    # (b, q_tile) and reused for all T key frames.
    @pl.when(tk == 0)
    def _():
        q_scr_ref[...] = jnp.dot(
            wq_ref[...], xq_ref[...], preferred_element_type=jnp.float32
        ).astype(op_dtype)

    x_k = xk_ref[...]
    q = q_scr_ref[...]

    # 1x1x1 conv projections for this key frame (channels on sublanes, HW on lanes).
    m = jnp.dot(wm_ref[...], x_k, preferred_element_type=jnp.float32)   # (Ch, HW) f32
    v = jnp.dot(wv_ref[...], x_k, preferred_element_type=jnp.float32)   # (Ch, HW) f32

    # scores (HW, TQ): contract the channel (sublane) axis of both lane-dense
    # operands directly on the MXU -- no XLU transpose, no (HW, Ch) intermediate.
    s = jax.lax.dot_general(
        m.astype(op_dtype), q,
        dimension_numbers=(((0,), (0,)), ((), ())),
        preferred_element_type=jnp.float32)                              # (HW, TQ)

    # softmax over the key-frame spatial axis (axis 0); normalisation is deferred
    # until after the A@V matmul (reciprocal-multiply instead of HW*TQ divides).
    s = s - jnp.max(s, axis=0, keepdims=True)
    p = jnp.exp(s)                                                       # (HW, TQ) f32
    denom = jnp.sum(p, axis=0, keepdims=True)                            # (1, TQ)

    r = jnp.dot(v.astype(op_dtype), p.astype(op_dtype),
                preferred_element_type=jnp.float32)                      # (Ch, TQ)
    r = r * pl.reciprocal(denom, approx=True)
    r_ref[...] = r.astype(r_ref.dtype)

    # V for this key frame. Its output block follows tk (changes every step), so
    # write it unconditionally: redundant only when q_tiles > 1, always correct.
    v_ref[...] = v.astype(v_ref.dtype)


def attend_forward(x, wq, wm, wv, tile_q=None, vmem_budget_bytes=24 * 1024 * 1024):
    """x:(B,C,T,H,W), wq/wm/wv:(C//2, C). Returns (R:(B,Ch,T,T,H,W), V:(B,Ch,T,H,W))."""
    B, C, T, H, W = x.shape
    Ch = wq.shape[0]
    HW = H * W
    NQ = T * HW

    assert HW % 128 == 0, "H*W must be a multiple of 128 for lane-aligned key frames"

    esize = jnp.dtype(x.dtype).itemsize

    def vmem_bytes(tq):
        io = (2 * C * tq          # x query slab (double-buffered)
              + 2 * C * HW        # x key frame
              + 3 * 2 * Ch * C    # weights
              + 2 * Ch * tq       # R tile
              + 2 * Ch * HW       # V tile
              + Ch * tq)          # Q scratch
        return io * esize + 3 * HW * tq * 4   # + f32 score/exp/prob temporaries

    if tile_q is None:
        if NQ <= 2048:
            tile_q = NQ
        else:
            tile_q = 2048
            while NQ % tile_q != 0:
                tile_q -= 128
        # shrink until the double-buffered working set fits the VMEM budget
        while tile_q % 256 == 0 and vmem_bytes(tile_q) > vmem_budget_bytes:
            tile_q //= 2
        # keep >= 2 independent parallel grid units (both v7x TensorCores busy)
        while B * (NQ // tile_q) < 2 and tile_q % 256 == 0:
            tile_q //= 2
    assert NQ % tile_q == 0 and tile_q % 128 == 0
    q_tiles = NQ // tile_q

    # Free reshape (positions already contiguous, channels-major): no HBM transpose.
    x_flat = x.reshape(B, C, NQ)

    # Fold the 1/sqrt(C/2) attention scale into the query weight.
    wq_s = (wq.astype(jnp.float32) * (1.0 / (Ch ** 0.5))).astype(x.dtype)

    grid = (B, q_tiles, T)   # key-frame axis innermost: query slab + weights stay resident

    r_flat, v_flat = pl.pallas_call(
        _attend_kernel,
        out_shape=(
            jax.ShapeDtypeStruct((B, Ch, T * NQ), x.dtype),   # R, final layout (flattened)
            jax.ShapeDtypeStruct((B, Ch, T * HW), x.dtype),   # V, final layout (flattened)
        ),
        grid_spec=pltpu.PrefetchScalarGridSpec(
            num_scalar_prefetch=0,
            grid=grid,
            in_specs=[
                pl.BlockSpec((None, C, tile_q), lambda b, qi, tk: (b, 0, qi)),   # x: query slab
                pl.BlockSpec((None, C, HW),     lambda b, qi, tk: (b, 0, tk)),   # x: key frame
                pl.BlockSpec((Ch, C),           lambda b, qi, tk: (0, 0)),       # wq (scaled)
                pl.BlockSpec((Ch, C),           lambda b, qi, tk: (0, 0)),       # wm
                pl.BlockSpec((Ch, C),           lambda b, qi, tk: (0, 0)),       # wv
            ],
            out_specs=[
                pl.BlockSpec((None, Ch, tile_q),
                             lambda b, qi, tk: (b, 0, tk * q_tiles + qi)),       # R tile
                pl.BlockSpec((None, Ch, HW), lambda b, qi, tk: (b, 0, tk)),      # V tile
            ],
            scratch_shapes=[pltpu.VMEM((Ch, tile_q), x.dtype)],                  # cached Q
        ),
        compiler_params=pltpu.CompilerParams(
            dimension_semantics=("parallel", "parallel", "arbitrary"),
            vmem_limit_bytes=32 * 1024 * 1024),
    )(x_flat, x_flat, wq_s, wm, wv)

    # Free reshapes only -- no wrapper transposes.
    R = r_flat.reshape(B, Ch, T, T, H, W)   # (B, Ch, Tk, Tq, H, W)
    V = v_flat.reshape(B, Ch, T, H, W)
    return R, V


def reference_forward(x, wq, wm, wv):
    """Pure-JAX mirror of AttendModule.forward (f32, HIGHEST precision)."""
    B, C, T, H, W = x.shape
    Ch = wq.shape[0]
    hp = jax.lax.Precision.HIGHEST
    Q = jnp.einsum('oc,bcthw->bothw', wq, x, precision=hp)
    M = jnp.einsum('oc,bcthw->bothw', wm, x, precision=hp)
    V = jnp.einsum('oc,bcthw->bothw', wv, x, precision=hp)
    NQ, HW = T * H * W, H * W
    Qf = Q.reshape(B, Ch, NQ).transpose(0, 2, 1)                      # (B, NQ, Ch)
    Mf = M.reshape(B, Ch, NQ)                                         # (B, Ch, NK)
    A = jnp.einsum('bqc,bck->bqk', Qf, Mf, precision=hp) / jnp.sqrt(jnp.float32(Ch))
    A = A.reshape(B, NQ, T, HW)
    A = jax.nn.softmax(A, axis=-1)
    Vf = V.transpose(0, 2, 1, 3, 4).reshape(B, T, Ch, HW)             # (B, Tk, Ch, HW)
    R = jnp.einsum('bqtk,btck->btqc', A, Vf, precision=hp)            # (B, Tk, NQ, Ch)
    R = R.reshape(B, T, T, H, W, Ch).transpose(0, 5, 1, 2, 3, 4)      # (B, Ch, Tk, Tq, H, W)
    return R, V


if __name__ == "__main__":
    # Small shapes consistent with the module: 5-D input (B, C, T, H, W).
    B, inplanes, T, H, W = 2, 8, 4, 8, 16   # H*W = 128 (one lane width), NQ = 512
    Ch = inplanes // 2

    key = jax.random.PRNGKey(0)
    kx, kq, km, kv = jax.random.split(key, 4)
    x = jax.random.normal(kx, (B, inplanes, T, H, W), jnp.float32)
    # Conv3d(inplanes, inplanes//2, k=1, bias=False) weights, squeezed to (Ch, C).
    wq = jax.random.normal(kq, (Ch, inplanes), jnp.float32) * 0.2
    wm = jax.random.normal(km, (Ch, inplanes), jnp.float32) * 0.2
    wv = jax.random.normal(kv, (Ch, inplanes), jnp.float32) * 0.2

    # bf16 at the pallas_call boundary (halves every DMA byte, feeds bf16 MXU
    # matmuls); accumulation inside the kernel stays float32.
    x_bf, wq_bf, wm_bf, wv_bf = [a.astype(jnp.bfloat16) for a in (x, wq, wm, wv)]

    R, V = attend_forward(x_bf, wq_bf, wm_bf, wv_bf)
    R = jax.block_until_ready(R)
    V = jax.block_until_ready(V)

    # f32 reference evaluated on the same bf16-rounded inputs, so the check
    # isolates in-kernel error from input quantisation.
    R_ref, V_ref = reference_forward(x_bf.astype(jnp.float32),
                                     wq_bf.astype(jnp.float32),
                                     wm_bf.astype(jnp.float32),
                                     wv_bf.astype(jnp.float32))
    assert R.shape == (B, Ch, T, T, H, W)
    assert V.shape == (B, Ch, T, H, W)
    # Tolerance covers bf16 operand/output rounding and the approx reciprocal.
    assert jnp.allclose(V.astype(jnp.float32), V_ref, atol=2e-2, rtol=2e-2), "V mismatch"
    assert jnp.allclose(R.astype(jnp.float32), R_ref, atol=2e-2, rtol=2e-2), "R mismatch"

    print("KERNEL_OK")
</pallas_src>

<mosaic_0001>
module attributes {stable_mosaic.version = 11 : i64} {
  func.func @_attend_kernel(%arg0: i32, %arg1: i32, %arg2: i32, %arg3: memref<1x8x512xbf16, #tpu.memory_space<vmem>>, %arg4: memref<1x8x128xbf16, #tpu.memory_space<vmem>>, %arg5: memref<4x8xbf16, #tpu.memory_space<vmem>>, %arg6: memref<4x8xbf16, #tpu.memory_space<vmem>>, %arg7: memref<4x8xbf16, #tpu.memory_space<vmem>>, %arg8: memref<1x4x512xbf16, #tpu.memory_space<vmem>>, %arg9: memref<1x4x128xbf16, #tpu.memory_space<vmem>>, %arg10: memref<4x512xbf16, #tpu.memory_space<vmem>>) attributes {dimension_semantics = [#tpu.dimension_semantics<parallel>, #tpu.dimension_semantics<parallel>, #tpu.dimension_semantics<arbitrary>], iteration_bounds = array<i64: 2, 1, 4>, scalar_prefetch = 0 : i64, scratch_operands = 1 : i64, tpu.core_type = #tpu.core_type<tc>, window_params = [{transform_indices = @transform_0, window_bounds = array<i64: 1, 8, 512>}, {transform_indices = @transform_1, window_bounds = array<i64: 1, 8, 128>}, {pipeline_mode = #tpu.pipeline_mode<synchronous>, transform_indices = @transform_2, window_bounds = array<i64: 4, 8>}, {pipeline_mode = #tpu.pipeline_mode<synchronous>, transform_indices = @transform_3, window_bounds = array<i64: 4, 8>}, {pipeline_mode = #tpu.pipeline_mode<synchronous>, transform_indices = @transform_4, window_bounds = array<i64: 4, 8>}, {transform_indices = @transform_5, window_bounds = array<i64: 1, 4, 512>}, {transform_indices = @transform_6, window_bounds = array<i64: 1, 4, 128>}]} {
    %c0_i32 = arith.constant 0 : i32
    %0 = arith.cmpi eq, %arg2, %c0_i32 : i32
    %1 = arith.extui %0 : i1 to i32
    %c0_i32_0 = arith.constant 0 : i32
    %2 = arith.cmpi ne, %1, %c0_i32_0 : i32
    scf.if %2 {
      %c0_20 = arith.constant 0 : index
      %c0_21 = arith.constant 0 : index
      %33 = vector.load %arg5[%c0_20, %c0_21] : memref<4x8xbf16, #tpu.memory_space<vmem>>, vector<4x8xbf16>
      %c0_22 = arith.constant 0 : index
      %c0_23 = arith.constant 0 : index
      %c0_24 = arith.constant 0 : index
      %34 = vector.load %arg3[%c0_22, %c0_23, %c0_24] : memref<1x8x512xbf16, #tpu.memory_space<vmem>>, vector<1x8x512xbf16>
      %35 = vector.shape_cast %34 : vector<1x8x512xbf16> to vector<8x512xbf16>
      %cst_25 = arith.constant dense<0.000000e+00> : vector<4x512xf32>
      %36 = tpu.matmul %33, %35, %cst_25 {dimension_numbers = #tpu.dot_dimension_numbers<[1], [0], [0], [1], [0, 0, 1, 1], [], []>} : vector<4x8xbf16>, vector<8x512xbf16>, vector<4x512xf32> -> vector<4x512xf32>
      %37 = arith.truncf %36 : vector<4x512xf32> to vector<4x512xbf16>
      %c0_26 = arith.constant 0 : index
      %c0_27 = arith.constant 0 : index
      %38 = vector.load %arg10[%c0_26, %c0_27] : memref<4x512xbf16, #tpu.memory_space<vmem>>, vector<4x512xbf16>
      tpu.vector_store %arg10[%c0_26, %c0_27], %37 {strides = array<i32>} : memref<4x512xbf16, #tpu.memory_space<vmem>>, vector<4x512xbf16>,
    } else {
    }
    %c0 = arith.constant 0 : index
    %c0_1 = arith.constant 0 : index
    %c0_2 = arith.constant 0 : index
    %3 = vector.load %arg4[%c0, %c0_1, %c0_2] : memref<1x8x128xbf16, #tpu.memory_space<vmem>>, vector<1x8x128xbf16>
    %4 = vector.shape_cast %3 : vector<1x8x128xbf16> to vector<8x128xbf16>
    %c0_3 = arith.constant 0 : index
    %c0_4 = arith.constant 0 : index
    %5 = vector.load %arg10[%c0_3, %c0_4] : memref<4x512xbf16, #tpu.memory_space<vmem>>, vector<4x512xbf16>
    %c0_5 = arith.constant 0 : index
    %c0_6 = arith.constant 0 : index
    %6 = vector.load %arg6[%c0_5, %c0_6] : memref<4x8xbf16, #tpu.memory_space<vmem>>, vector<4x8xbf16>
    %cst = arith.constant dense<0.000000e+00> : vector<4x128xf32>
    %7 = tpu.matmul %6, %4, %cst {dimension_numbers = #tpu.dot_dimension_numbers<[1], [0], [0], [1], [0, 0, 1, 1], [], []>} : vector<4x8xbf16>, vector<8x128xbf16>, vector<4x128xf32> -> vector<4x128xf32>
    %c0_7 = arith.constant 0 : index
    %c0_8 = arith.constant 0 : index
    %8 = vector.load %arg7[%c0_7, %c0_8] : memref<4x8xbf16, #tpu.memory_space<vmem>>, vector<4x8xbf16>
    %cst_9 = arith.constant dense<0.000000e+00> : vector<4x128xf32>
    %9 = tpu.matmul %8, %4, %cst_9 {dimension_numbers = #tpu.dot_dimension_numbers<[1], [0], [0], [1], [0, 0, 1, 1], [], []>} : vector<4x8xbf16>, vector<8x128xbf16>, vector<4x128xf32> -> vector<4x128xf32>
    %10 = arith.truncf %7 : vector<4x128xf32> to vector<4x128xbf16>
    %cst_10 = arith.constant dense<0.000000e+00> : vector<128x512xf32>
    %11 = tpu.matmul %10, %5, %cst_10 {dimension_numbers = #tpu.dot_dimension_numbers<[0], [0], [1], [1], [0, 1, 1, 1], [], []>} : vector<4x128xbf16>, vector<4x512xbf16>, vector<128x512xf32> -> vector<128x512xf32>
    %cst_11 = arith.constant dense<0xFF800000> : vector<512xf32>
    %12 = vector.multi_reduction <maximumf>, %11, %cst_11 [0] : vector<128x512xf32> to vector<512xf32>
    %13 = vector.shape_cast %12 : vector<512xf32> to vector<1x512xf32>
    %14 = vector.broadcast %13 : vector<1x512xf32> to vector<128x512xf32>
    %15 = arith.subf %11, %14 : vector<128x512xf32>
    %16 = math.exp %15 : vector<128x512xf32>
    %cst_12 = arith.constant dense<0.000000e+00> : vector<512xf32>
    %17 = vector.multi_reduction <add>, %16, %cst_12 [0] : vector<128x512xf32> to vector<512xf32>
    %18 = vector.shape_cast %17 : vector<512xf32> to vector<1x512xf32>
    %19 = arith.truncf %9 : vector<4x128xf32> to vector<4x128xbf16>
    %20 = arith.truncf %16 : vector<128x512xf32> to vector<128x512xbf16>
    %cst_13 = arith.constant dense<0.000000e+00> : vector<4x512xf32>
    %21 = tpu.matmul %19, %20, %cst_13 {dimension_numbers = #tpu.dot_dimension_numbers<[1], [0], [0], [1], [0, 0, 1, 1], [], []>} : vector<4x128xbf16>, vector<128x512xbf16>, vector<4x512xf32> -> vector<4x512xf32>
    %22 = tpu.reciprocal %18 {approx = true} : vector<1x512xf32> -> vector<1x512xf32>
    %23 = vector.broadcast %22 : vector<1x512xf32> to vector<4x512xf32>
    %24 = arith.mulf %21, %23 : vector<4x512xf32>
    %25 = arith.truncf %24 : vector<4x512xf32> to vector<4x512xbf16>
    %c0_14 = arith.constant 0 : index
    %c0_15 = arith.constant 0 : index
    %c0_16 = arith.constant 0 : index
    %26 = vector.load %arg8[%c0_14, %c0_15, %c0_16] : memref<1x4x512xbf16, #tpu.memory_space<vmem>>, vector<1x4x512xbf16>
    %27 = vector.shape_cast %26 : vector<1x4x512xbf16> to vector<4x512xbf16>
    %28 = vector.shape_cast %25 : vector<4x512xbf16> to vector<1x4x512xbf16>
    tpu.vector_store %arg8[%c0_14, %c0_15, %c0_16], %28 {strides = array<i32>} : memref<1x4x512xbf16, #tpu.memory_space<vmem>>, vector<1x4x512xbf16>,
    %29 = arith.truncf %9 : vector<4x128xf32> to vector<4x128xbf16>
    %c0_17 = arith.constant 0 : index
    %c0_18 = arith.constant 0 : index
    %c0_19 = arith.constant 0 : index
    %30 = vector.load %arg9[%c0_17, %c0_18, %c0_19] : memref<1x4x128xbf16, #tpu.memory_space<vmem>>, vector<1x4x128xbf16>
    %31 = vector.shape_cast %30 : vector<1x4x128xbf16> to vector<4x128xbf16>
    %32 = vector.shape_cast %29 : vector<4x128xbf16> to vector<1x4x128xbf16>
    tpu.vector_store %arg9[%c0_17, %c0_18, %c0_19], %32 {strides = array<i32>} : memref<1x4x128xbf16, #tpu.memory_space<vmem>>, vector<1x4x128xbf16>,
    return
  }
  func.func @transform_0(%arg0: i32, %arg1: i32, %arg2: i32) -> (i32, i32, i32) {
    %c0_i32 = arith.constant 0 : i32
    %c0_i32_0 = arith.constant 0 : i32
    return %arg0, %c0_i32, %arg1 : i32, i32, i32
  }
  func.func @transform_1(%arg0: i32, %arg1: i32, %arg2: i32) -> (i32, i32, i32) {
    %c0_i32 = arith.constant 0 : i32
    %c0_i32_0 = arith.constant 0 : i32
    return %arg0, %c0_i32, %arg2 : i32, i32, i32
  }
  func.func @transform_2(%arg0: i32, %arg1: i32, %arg2: i32) -> (i32, i32) {
    %c0_i32 = arith.constant 0 : i32
    %c0_i32_0 = arith.constant 0 : i32
    %c0_i32_1 = arith.constant 0 : i32
    return %c0_i32, %c0_i32_0 : i32, i32
  }
  func.func @transform_3(%arg0: i32, %arg1: i32, %arg2: i32) -> (i32, i32) {
    %c0_i32 = arith.constant 0 : i32
    %c0_i32_0 = arith.constant 0 : i32
    %c0_i32_1 = arith.constant 0 : i32
    return %c0_i32, %c0_i32_0 : i32, i32
  }
  func.func @transform_4(%arg0: i32, %arg1: i32, %arg2: i32) -> (i32, i32) {
    %c0_i32 = arith.constant 0 : i32
    %c0_i32_0 = arith.constant 0 : i32
    %c0_i32_1 = arith.constant 0 : i32
    return %c0_i32, %c0_i32_0 : i32, i32
  }
  func.func @transform_5(%arg0: i32, %arg1: i32, %arg2: i32) -> (i32, i32, i32) {
    %c1_i32 = arith.constant 1 : i32
    %0 = arith.muli %arg2, %c1_i32 : i32
    %1 = arith.addi %0, %arg1 : i32
    %c0_i32 = arith.constant 0 : i32
    %c0_i32_0 = arith.constant 0 : i32
    return %arg0, %c0_i32, %1 : i32, i32, i32
  }
  func.func @transform_6(%arg0: i32, %arg1: i32, %arg2: i32) -> (i32, i32, i32) {
    %c0_i32 = arith.constant 0 : i32
    %c0_i32_0 = arith.constant 0 : i32
    return %arg0, %c0_i32, %arg2 : i32, i32, i32
  }
}

</mosaic_0001>

<llo_original>
// kernel: tpu_custom_call.1
$region0: #{tpu_custom_call.1}
  #allocation0 [shape = 'u32[]', space=smem, size = 0x4, offset = 0x4, fixed_abs, tag = 'smem constant byte address 0x4 - core index']
  #allocation1 [shape = 'u32[144,128]{1,0:T(1,128)}', space=vmem, size = 0x12000, scoped, tag = 'internal scratch']
  #allocation2 [shape = 'bf16[4,512]{1,0:T(4,128)(2,1)}', space=vmem, size = 0x1000, scoped, tag = 'scratch operand']
  %s0 = inlined_call_operand.hbm [shape: bf16[2,8,512], index: 0, kind: input, shape index: {}]
  %s1 = inlined_call_operand.hbm [shape: bf16[2,8,512], index: 1, kind: input, shape index: {}]
  %s2 = inlined_call_operand.vmem [shape: bf16[4,8], index: 2, kind: input, shape index: {}]
  %s3 = inlined_call_operand.vmem [shape: bf16[4,8], index: 3, kind: input, shape index: {}]
  %s4 = inlined_call_operand.vmem [shape: bf16[4,8], index: 4, kind: input, shape index: {}]
  %s5 = inlined_call_operand.hbm [shape: bf16[2,4,2048], index: 5, kind: output, shape index: {0}]
  %s6 = inlined_call_operand.hbm [shape: bf16[2,4,512], index: 6, kind: output, shape index: {1}]
  %7 = xla_tuple %s5, %s6
  %s8 = sld [smem:[#allocation0]]
  $region73: #{tpu_custom_call.1} parent=0
    _
  %s10 = ssub.s32 1, %s8
  %s11 = scalar_select 0, %s10, %s8
  $region1: #{tpu_custom_call.1} parent=0
    #allocation3 [shape = 'u8[16384]{0}', space=vmem, size = 0x4000, scoped, tag = 'input window, operand 0']
    #allocation4 [shape = 's32[2]{0}', space=sflag, size = 0x8, scoped, tag = 'scoped memory for tpu_custom_call.1']
    #allocation5 [shape = 's32[2]{0}', space=sflag, size = 0x8, scoped, tag = 'scoped memory for tpu_custom_call.1']
    #allocation6 [shape = 'u8[4096]{0}', space=vmem, size = 0x1000, scoped, tag = 'input window, operand 1']
    #allocation7 [shape = 's32[2]{0}', space=sflag, size = 0x8, scoped, tag = 'scoped memory for tpu_custom_call.1']
    #allocation8 [shape = 'u8[8192]{0}', space=vmem, size = 0x2000, scoped, tag = 'output window, operand 0']
    #allocation9 [shape = 'u8[2048]{0}', space=vmem, size = 0x800, scoped, tag = 'output window, operand 1']
    #allocation10 [shape = 's32[2]{0}', space=sflag, size = 0x8, scoped, tag = 'scoped memory for tpu_custom_call.1']
    %12 = vsyncpa [#allocation4], 0
    %s13 = scalar_lea.sflag [#allocation4], 1
    %14 = vsyncpa %s13, 0
    %15 = vsyncpa [#allocation7], 0
    %s16 = scalar_lea.sflag [#allocation7], 1
    %17 = vsyncpa %s16, 0
    %18 = vsyncpa [#allocation5], 0
    %s19 = scalar_lea.sflag [#allocation5], 1
    %20 = vsyncpa %s19, 0
    %21 = vsyncpa [#allocation10], 0
    %s22 = scalar_lea.sflag [#allocation10], 1
    %23 = vsyncpa %s22, 0
    loop: start=0, step=1, limit=10
    $region2: #{tpu_custom_call.1} parent=1 // loop_pre_header
      _
    $region3: #{tpu_custom_call.1} parent=1 // loop_header
      %s25 = sphi 0, %s29
      %p26 = scmp.ge.s32.totalorder %s25, 10
      %s32 = sphi 0, %s51
      %s33 = sphi 0, %s47
      %s34 = sphi 0, %s43
      %s35 = sphi 0, %s32
      %s36 = sphi 0, %s33
      %s37 = sphi 0, %s34
      %s38 = sphi 0, %s35
      %s39 = sphi 0, %s36
      %s40 = sphi 0, %s37
      %s56 = sphi 0, %s58
      %s59 = sphi 0, %s56
      %s60 = sphi 0, %s59
      %s76 = sphi 0, %s60
      %s84 = sphi 0, %s86
      %s87 = sphi 0, %s84
      %s88 = sphi 0, %s87
      %s104 = sphi 0, %s88
      %s108 = sphi 0, %s108
      %s110 = sphi 0, %s108
      %s111 = sphi 0, %s110
      %s125 = sphi 0, %s111
      %s129 = sphi 0, %s129
      %s131 = sphi 0, %s129
      %s132 = sphi 0, %s131
      %s146 = sphi 0, %s132
      %s150 = sphi 0, %s150
      %s152 = sphi 0, %s150
      %s153 = sphi 0, %s152
      %s167 = sphi 0, %s153
      %s177 = sphi 0, %s179
      %s180 = sphi 0, %s177
      %s181 = sphi 0, %s180
      %s197 = sphi 0, %s181
      %s205 = sphi 0, %s207
      %s208 = sphi 0, %s205
      %s209 = sphi 0, %s208
      %s225 = sphi 0, %s209
    $region4: #{tpu_custom_call.1} parent=1 // loop_header_branch
      %28 = sbr.rel (%p26) target = $region8
    $region5: #{tpu_custom_call.1} parent=1 // loop_body
      %s30 = ssub.s32 %s25, 1
      %s31 = ssub.s32 %s25, 2
      %s41 = sadd.s32 1, %s34
      %p42 = scmp.ge.s32.totalorder %s41, 4
      %s43 = scalar_select %p42, 0, %s41
      %s44 = sadd.s32 1, %s33
      %s45 = scalar_select %p42, %s44, %s33
      %p46 = scmp.ge.s32.totalorder %s45, 1
      %s47 = scalar_select %p46, 0, %s45
      %s48 = sadd.s32 1, %s32
      %s49 = scalar_select %p46, %s48, %s32
      %p50 = scmp.ge.s32.totalorder %s49, 2
      %s51 = scalar_select %p50, 0, %s49
      %s52 = ssub.s32 %s32, %s51
      %s53 = ssub.s32 %s33, %s47
      %s54 = sor.u32 %s52, %s53
      %p55 = scmp.eq.s32.totalorder %s54, 0
      %s57 = sadd.s32 %s56, 1
      %s58 = scalar_select %p55, %s56, %s57
      %p61 = pneg %p55
      %p62 = scmp.eq.s32.totalorder %s25, 7
      %p63 = por %p61, %p62
      %p64 = scmp.ne.s32.totalorder %s56, %s59
      %p65 = scmp.eq.s32.totalorder %s25, 0
      %p66 = por %p64, %p65
      %p67 = scmp.ne.s32.totalorder %s56, %s59
      %p68 = scmp.eq.s32.totalorder %s30, 7
      %p69 = por %p67, %p68
      %p70 = scmp.ne.s32.totalorder %s59, %s60
      %p71 = scmp.eq.s32.totalorder %s30, 0
      %p72 = por %p70, %p71
      %p73 = scmp.ne.s32.totalorder %s59, %s60
      %p74 = scmp.eq.s32.totalorder %s31, 7
      %p75 = por %p73, %p74
      %p77 = scmp.ne.s32.totalorder %s60, %s76
      %p78 = scmp.eq.s32.totalorder %s31, 0
      %p79 = por %p77, %p78
      %s80 = ssub.s32 %s32, %s51
      %s81 = ssub.s32 %s34, %s43
      %s82 = sor.u32 %s80, %s81
      %p83 = scmp.eq.s32.totalorder %s82, 0
      %s85 = sadd.s32 %s84, 1
      %s86 = scalar_select %p83, %s84, %s85
      %p89 = pneg %p83
      %p90 = scmp.eq.s32.totalorder %s25, 7
      %p91 = por %p89, %p90
      %p92 = scmp.ne.s32.totalorder %s84, %s87
      %p93 = scmp.eq.s32.totalorder %s25, 0
      %p94 = por %p92, %p93
      %p95 = scmp.ne.s32.totalorder %s84, %s87
      %p96 = scmp.eq.s32.totalorder %s30, 7
      %p97 = por %p95, %p96
      %p98 = scmp.ne.s32.totalorder %s87, %s88
      %p99 = scmp.eq.s32.totalorder %s30, 0
      %p100 = por %p98, %p99
      %p101 = scmp.ne.s32.totalorder %s87, %s88
      %p102 = scmp.eq.s32.totalorder %s31, 7
      %p103 = por %p101, %p102
      %p105 = scmp.ne.s32.totalorder %s88, %s104
      %p106 = scmp.eq.s32.totalorder %s31, 0
      %p107 = por %p105, %p106
      %s109 = sadd.s32 %s108, 1
      %p112 = scmp.eq.s32.totalorder %s25, 7
      %p113 = scmp.ne.s32.totalorder %s108, %s110
      %p114 = scmp.eq.s32.totalorder %s25, 0
      %p115 = por %p113, %p114
      %p116 = scmp.ne.s32.totalorder %s108, %s110
      %p117 = scmp.eq.s32.totalorder %s30, 7
      %p118 = por %p116, %p117
      %p119 = scmp.ne.s32.totalorder %s110, %s111
      %p120 = scmp.eq.s32.totalorder %s30, 0
      %p121 = por %p119, %p120
      %p122 = scmp.ne.s32.totalorder %s110, %s111
      %p123 = scmp.eq.s32.totalorder %s31, 7
      %p124 = por %p122, %p123
      %p126 = scmp.ne.s32.totalorder %s111, %s125
      %p127 = scmp.eq.s32.totalorder %s31, 0
      %p128 = por %p126, %p127
      %s130 = sadd.s32 %s129, 1
      %p133 = scmp.eq.s32.totalorder %s25, 7
      %p134 = scmp.ne.s32.totalorder %s129, %s131
      %p135 = scmp.eq.s32.totalorder %s25, 0
      %p136 = por %p134, %p135
      %p137 = scmp.ne.s32.totalorder %s129, %s131
      %p138 = scmp.eq.s32.totalorder %s30, 7
      %p139 = por %p137, %p138
      %p140 = scmp.ne.s32.totalorder %s131, %s132
      %p141 = scmp.eq.s32.totalorder %s30, 0
      %p142 = por %p140, %p141
      %p143 = scmp.ne.s32.totalorder %s131, %s132
      %p144 = scmp.eq.s32.totalorder %s31, 7
      %p145 = por %p143, %p144
      %p147 = scmp.ne.s32.totalorder %s132, %s146
      %p148 = scmp.eq.s32.totalorder %s31, 0
      %p149 = por %p147, %p148
      %s151 = sadd.s32 %s150, 1
      %p154 = scmp.eq.s32.totalorder %s25, 7
      %p155 = scmp.ne.s32.totalorder %s150, %s152
      %p156 = scmp.eq.s32.totalorder %s25, 0
      %p157 = por %p155, %p156
      %p158 = scmp.ne.s32.totalorder %s150, %s152
      %p159 = scmp.eq.s32.totalorder %s30, 7
      %p160 = por %p158, %p159
      %p161 = scmp.ne.s32.totalorder %s152, %s153
      %p162 = scmp.eq.s32.totalorder %s30, 0
      %p163 = por %p161, %p162
      %p164 = scmp.ne.s32.totalorder %s152, %s153
      %p165 = scmp.eq.s32.totalorder %s31, 7
      %p166 = por %p164, %p165
      %p168 = scmp.ne.s32.totalorder %s153, %s167
      %p169 = scmp.eq.s32.totalorder %s31, 0
      %p170 = por %p168, %p169
      %s171 = sadd.s32 %s34, %s33
      %s172 = sadd.s32 %s43, %s47
      %s173 = ssub.s32 %s32, %s51
      %s174 = ssub.s32 %s171, %s172
      %s175 = sor.u32 %s173, %s174
      %p176 = scmp.eq.s32.totalorder %s175, 0
      %s178 = sadd.s32 %s177, 1
      %s179 = scalar_select %p176, %s177, %s178
      %p182 = pneg %p176
      %p183 = scmp.eq.s32.totalorder %s25, 7
      %p184 = por %p182, %p183
      %p185 = scmp.ne.s32.totalorder %s177, %s180
      %p186 = scmp.eq.s32.totalorder %s25, 0
      %p187 = por %p185, %p186
      %p188 = scmp.ne.s32.totalorder %s177, %s180
      %p189 = scmp.eq.s32.totalorder %s30, 7
      %p190 = por %p188, %p189
      %p191 = scmp.ne.s32.totalorder %s180, %s181
      %p192 = scmp.eq.s32.totalorder %s30, 0
      %p193 = por %p191, %p192
      %p194 = scmp.ne.s32.totalorder %s180, %s181
      %p195 = scmp.eq.s32.totalorder %s31, 7
      %p196 = por %p194, %p195
      %p198 = scmp.ne.s32.totalorder %s181, %s197
      %p199 = scmp.eq.s32.totalorder %s31, 0
      %p200 = por %p198, %p199
      %s201 = ssub.s32 %s32, %s51
      %s202 = ssub.s32 %s34, %s43
      %s203 = sor.u32 %s201, %s202
      %p204 = scmp.eq.s32.totalorder %s203, 0
      %s206 = sadd.s32 %s205, 1
      %s207 = scalar_select %p204, %s205, %s206
      %p210 = pneg %p204
      %p211 = scmp.eq.s32.totalorder %s25, 7
      %p212 = por %p210, %p211
      %p213 = scmp.ne.s32.totalorder %s205, %s208
      %p214 = scmp.eq.s32.totalorder %s25, 0
      %p215 = por %p213, %p214
      %p216 = scmp.ne.s32.totalorder %s205, %s208
      %p217 = scmp.eq.s32.totalorder %s30, 7
      %p218 = por %p216, %p217
      %p219 = scmp.ne.s32.totalorder %s208, %s209
      %p220 = scmp.eq.s32.totalorder %s30, 0
      %p221 = por %p219, %p220
      %p222 = scmp.ne.s32.totalorder %s208, %s209
      %p223 = scmp.eq.s32.totalorder %s31, 7
      %p224 = por %p222, %p223
      %p226 = scmp.ne.s32.totalorder %s209, %s225
      %p227 = scmp.eq.s32.totalorder %s31, 0
      %p228 = por %p226, %p227
      %p229 = scmp.le.s32.totalorder 1, %s25
      %p230 = scmp.lt.s32.totalorder %s25, 9
      %p231 = pnand %p229, %p230
      %p232 = pneg %p231
      // Predicated region
      $region9: #{tpu_custom_call.1} parent=5 // pred_check
        _
      $region10: #{tpu_custom_call.1} parent=5 // pred_check_branch
        %234 = sbr.rel (%p231) target = $region12
      $region11: #{tpu_custom_call.1} parent=5 // pred_region
        %s235 = ssub.s32 %s25, 1
        // Predicated region
        $region13: #{tpu_custom_call.1} parent=11 // pred_check
          %p236 = pneg %p121
        $region14: #{tpu_custom_call.1} parent=11 // pred_check_branch
          %238 = sbr.rel (%p236) target = $region16
        $region15: #{tpu_custom_call.1} parent=11 // pred_region
          _
        $region16: #{tpu_custom_call.1} parent=11 // pred_fallthru
          _
        // Predicated region
        $region17: #{tpu_custom_call.1} parent=11 // pred_check
          %p239 = pneg %p142
        $region18: #{tpu_custom_call.1} parent=11 // pred_check_branch
          %241 = sbr.rel (%p239) target = $region20
        $region19: #{tpu_custom_call.1} parent=11 // pred_region
          _
        $region20: #{tpu_custom_call.1} parent=11 // pred_fallthru
          _
        // Predicated region
        $region21: #{tpu_custom_call.1} parent=11 // pred_check
          %p242 = pneg %p163
        $region22: #{tpu_custom_call.1} parent=11 // pred_check_branch
          %244 = sbr.rel (%p242) target = $region24
        $region23: #{tpu_custom_call.1} parent=11 // pred_region
          _
        $region24: #{tpu_custom_call.1} parent=11 // pred_fallthru
          _
      $region12: #{tpu_custom_call.1} parent=5 // pred_fallthru
        _
      %p245 = scmp.lt.s32.totalorder %s25, 8
      // Predicated region
      $region25: #{tpu_custom_call.1} parent=5 // pred_check
        %p246 = pneg %p245
      $region26: #{tpu_custom_call.1} parent=5 // pred_check_branch
        %248 = sbr.rel (%p246) target = $region28
      $region27: #{tpu_custom_call.1} parent=5 // pred_region
        // Predicated region
        $region29: #{tpu_custom_call.1} parent=27 // pred_check
          %p249 = pneg %p66
        $region30: #{tpu_custom_call.1} parent=27 // pred_check_branch
          %251 = sbr.rel (%p249) target = $region32
        $region31: #{tpu_custom_call.1} parent=27 // pred_region
          %s252 = sand.u32 %s56, 1
          %s253 = scalar_lea.sflag [#allocation4], %s252
          %s254 = sand.u32 %s56, 1
          %s255 = smul.addr %s254, 16
          %s256 = scalar_lea.vmem [#allocation3], %s255
          %s257 = smul.u32 4, %s33
          %s259 = ssub.s32 256, 256
          %260 = vsyncadd %s253, %s259
          %s261 = smul.addr %s32, 4
          %s262 = sadd.s32 %s257, %s261
          %s263 = smul.addr %s262, 64
          %s264 = scalar_lea.hbm %s0, %s263
          %s266 = sshll.u32 %s256, 4
          %s267 = int_to_ptr.vmem [resolvable:$true] %s266
          %269 = dma.hbm_to_vmem [thread:$0]  %s264, 256, %s267, %s253
        $region32: #{tpu_custom_call.1} parent=27 // pred_fallthru
          _
        // Predicated region
        $region33: #{tpu_custom_call.1} parent=27 // pred_check
          %p270 = pneg %p94
        $region34: #{tpu_custom_call.1} parent=27 // pred_check_branch
          %272 = sbr.rel (%p270) target = $region36
        $region35: #{tpu_custom_call.1} parent=27 // pred_region
          %s273 = sand.u32 %s84, 1
          %s274 = scalar_lea.sflag [#allocation7], %s273
          %s275 = sand.u32 %s84, 1
          %s276 = smul.addr %s275, 4
          %s277 = scalar_lea.vmem [#allocation6], %s276
          %s279 = ssub.s32 64, 64
          %280 = vsyncadd %s274, %s279
          %s281 = smul.addr %s32, 4
          %s282 = sadd.s32 %s34, %s281
          %s283 = smul.addr %s282, 64
          %s284 = scalar_lea.hbm %s1, %s283
          %s286 = sshll.u32 %s277, 4
          %s287 = int_to_ptr.vmem [resolvable:$true] %s286
          %289 = dma.hbm_to_vmem [thread:$0]  %s284, 64, %s287, %s274
        $region36: #{tpu_custom_call.1} parent=27 // pred_fallthru
          _
      $region28: #{tpu_custom_call.1} parent=5 // pred_fallthru
        _
      %p290 = scmp.le.s32.totalorder 1, %s25
      %p291 = scmp.lt.s32.totalorder %s25, 9
      %p292 = pnand %p290, %p291
      %p293 = pneg %p292
      // Predicated region
      $region37: #{tpu_custom_call.1} parent=5 // pred_check
        _
      $region38: #{tpu_custom_call.1} parent=5 // pred_check_branch
        %295 = sbr.rel (%p292) target = $region40
      $region39: #{tpu_custom_call.1} parent=5 // pred_region
        %s296 = ssub.s32 %s25, 1
        %s297 = sand.u32 %s59, 1
        %s298 = scalar_lea.sflag [#allocation4], %s297
        %s299 = sand.u32 %s59, 1
        %s300 = smul.addr %s299, 16
        %s301 = scalar_lea.vmem [#allocation3], %s300
        // Predicated region
        $region41: #{tpu_custom_call.1} parent=39 // pred_check
          %p302 = pneg %p72
        $region42: #{tpu_custom_call.1} parent=39 // pred_check_branch
          %304 = sbr.rel (%p302) target = $region44
        $region43: #{tpu_custom_call.1} parent=39 // pred_region
          %305 = dma.done %s298, 256
        $region44: #{tpu_custom_call.1} parent=39 // pred_fallthru
          _
        %s306 = sand.u32 %s87, 1
        %s307 = scalar_lea.sflag [#allocation7], %s306
        %s308 = sand.u32 %s87, 1
        %s309 = smul.addr %s308, 4
        %s310 = scalar_lea.vmem [#allocation6], %s309
        // Predicated region
        $region45: #{tpu_custom_call.1} parent=39 // pred_check
          %p311 = pneg %p100
        $region46: #{tpu_custom_call.1} parent=39 // pred_check_branch
          %313 = sbr.rel (%p311) target = $region48
        $region47: #{tpu_custom_call.1} parent=39 // pred_region
          %314 = dma.done %s307, 64
        $region48: #{tpu_custom_call.1} parent=39 // pred_fallthru
          _
        %s315 = sand.u32 %s59, 1
        %s316 = scalar_lea.sflag [#allocation4], %s315
        %s317 = sand.u32 %s59, 1
        %s318 = smul.addr %s317, 16
        %s319 = scalar_lea.vmem [#allocation3], %s318
        %p320 = pneg %p72
        %p321 = pneg %p69
        %s322 = sand.u32 %s87, 1
        %s323 = scalar_lea.sflag [#allocation7], %s322
        %s324 = sand.u32 %s87, 1
        %s325 = smul.addr %s324, 4
        %s326 = scalar_lea.vmem [#allocation6], %s325
        %p327 = pneg %p100
        %p328 = pneg %p97
        %p329 = pneg %p121
        %p330 = pneg %p118
        %p331 = pneg %p142
        %p332 = pneg %p139
        %p333 = pneg %p163
        %p334 = pneg %p160
        %p335 = pneg %p193
        %p336 = pneg %p190
        %s337 = sand.u32 %s180, 1
        %s338 = scalar_lea.sflag [#allocation5], %s337
        %s339 = sand.u32 %s180, 1
        %s340 = smul.addr %s339, 8
        %s341 = scalar_lea.vmem [#allocation8], %s340
        %p342 = pneg %p221
        %p343 = pneg %p218
        %s344 = sand.u32 %s208, 1
        %s345 = scalar_lea.sflag [#allocation10], %s344
        %s346 = sand.u32 %s208, 1
        %s347 = smul.addr %s346, 2
        %s348 = scalar_lea.vmem [#allocation9], %s347
        %s349 = smul.u32 4, %s36
        %s350 = sadd.s32 %s37, %s36
        %s351 = smul.u32 4, %s350
        %p353 = scmp.eq.s32.totalorder %s37, 0
        // Predicated region
        $region49: #{tpu_custom_call.1} parent=39 // pred_check
          %p354 = pneg %p353
        $region50: #{tpu_custom_call.1} parent=39 // pred_check_branch
          %356 = sbr.rel (%p354) target = $region52
        $region51: #{tpu_custom_call.1} parent=39 // pred_region
          %v357 = vld [vmem:[%s2] sm:$0x3]
          %v358 = vld [vmem:[%s301] sm:$0xff]
          %v359 = vld [vmem:[%s301 + $0x8] sm:$0xff]
          %v362 = vunpack.c.l.b16 %v358
          %v363 = vunpack.c.h.b16 %v358
          %v364 = vunpack.c.l.b16 %v359
          %v365 = vunpack.c.h.b16 %v359
          %v366 = vpack.c.b16 %v362, %v362
          %v367 = vpack.c.b16 %v363, %v363
          %v368 = vpack.c.b16 %v364, %v364
          %v369 = vpack.c.b16 %v365, %v365
          %vm370 = vcmask 64512
          %v372 = vsel %vm370, %v357, 0
          %vm374 = vcmask 1043456
          %v376 = vsel %vm374, %v366, 0
          %v379 = vsel %vm374, %v367, 0
          %v382 = vsel %vm374, %v368, 0
          %v385 = vsel %vm374, %v369, 0
          %387 = vmatprep.subr.bf16.mxu0 %v379
          %388 = vmatpush1.bf16.msra.mxu0 %v376
          %389 = vmatprep.subr.bf16.mxu0 0
          %390 = vmatpush1.bf16.msra.mxu0 0
          %391 = vmatprep.subr.bf16.mxu0 0
          %392 = vmatpush1.bf16.msra.mxu0 0
          %393 = vmatprep.subr.bf16.mxu0 0
          %394 = vmatpush1.bf16.msra.mxu0 0
          %395 = vmatprep.subr.bf16.mxu0 0
          %396 = vmatpush1.bf16.msra.mxu0 0
          %397 = vmatprep.subr.bf16.mxu0 0
          %398 = vmatpush1.bf16.msra.mxu0 0
          %399 = vmatprep.subr.bf16.mxu0 0
          %400 = vmatpush1.bf16.msra.mxu0 0
          %401 = vmatprep.subr.bf16.mxu0 0
          %402 = vmatpush1.bf16.msra.mxu0 0
          %403 = vmatprep.subr.bf16.mxu0 0
          %404 = vmatpush1.bf16.msra.mxu0 0
          %405 = vmatprep.subr.bf16.mxu0 0
          %406 = vmatpush1.bf16.msra.mxu0 0
          %407 = vmatprep.subr.bf16.mxu0 0
          %408 = vmatpush1.bf16.msra.mxu0 0
          %409 = vmatprep.subr.bf16.mxu0 0
          %410 = vmatpush1.bf16.msra.mxu0 0
          %411 = vmatprep.subr.bf16.mxu0 0
          %412 = vmatpush1.bf16.msra.mxu0 0
          %413 = vmatprep.subr.bf16.mxu0 0
          %414 = vmatpush1.bf16.msra.mxu0 0
          %415 = vmatprep.subr.bf16.mxu0 0
          %416 = vmatpush1.bf16.msra.mxu0 0
          %417 = vmatprep.subr.bf16.mxu0 0
          %418 = vmatpush1.bf16.msra.mxu0 0
          %419 = vmatprep.mubr.bf16.mxu0 0
          %420 = vmatmul.mubr.bf16.gmra.mrb[0].mxu0 %v372
          %v421 = vpop.f32.mrb[0].mxu0
          %v422 = vadd.f32 0.0, %v421
          %v423 = vpop.f32.mrb[0].mxu0
          %v424 = vadd.f32 0.0, %v423
          %v425 = vpop.f32.mrb[0].mxu0
          %v426 = vpop.f32.mrb[0].mxu0
          %427 = vdwg.mxu0
          %428 = vmatprep.subr.bf16.mxu0 %v385
          %429 = vmatpush1.bf16.msra.mxu0 %v382
          %430 = vmatprep.subr.bf16.mxu0 0
          %431 = vmatpush1.bf16.msra.mxu0 0
          %432 = vmatprep.subr.bf16.mxu0 0
          %433 = vmatpush1.bf16.msra.mxu0 0
          %434 = vmatprep.subr.bf16.mxu0 0
          %435 = vmatpush1.bf16.msra.mxu0 0
          %436 = vmatprep.subr.bf16.mxu0 0
          %437 = vmatpush1.bf16.msra.mxu0 0
          %438 = vmatprep.subr.bf16.mxu0 0
          %439 = vmatpush1.bf16.msra.mxu0 0
          %440 = vmatprep.subr.bf16.mxu0 0
          %441 = vmatpush1.bf16.msra.mxu0 0
          %442 = vmatprep.subr.bf16.mxu0 0
          %443 = vmatpush1.bf16.msra.mxu0 0
          %444 = vmatprep.subr.bf16.mxu0 0
          %445 = vmatpush1.bf16.msra.mxu0 0
          %446 = vmatprep.subr.bf16.mxu0 0
          %447 = vmatpush1.bf16.msra.mxu0 0
          %448 = vmatprep.subr.bf16.mxu0 0
          %449 = vmatpush1.bf16.msra.mxu0 0
          %450 = vmatprep.subr.bf16.mxu0 0
          %451 = vmatpush1.bf16.msra.mxu0 0
          %452 = vmatprep.subr.bf16.mxu0 0
          %453 = vmatpush1.bf16.msra.mxu0 0
          %454 = vmatprep.subr.bf16.mxu0 0
          %455 = vmatpush1.bf16.msra.mxu0 0
          %456 = vmatprep.subr.bf16.mxu0 0
          %457 = vmatpush1.bf16.msra.mxu0 0
          %458 = vmatprep.subr.bf16.mxu0 0
          %459 = vmatpush1.bf16.msra.mxu0 0
          %460 = vmatprep.mubr.bf16.mxu0 0
          %461 = vmatmul.mubr.bf16.gmra.mrb[0].mxu0 %v372
          %v462 = vpop.f32.mrb[0].mxu0
          %v463 = vadd.f32 0.0, %v462
          %v464 = vpop.f32.mrb[0].mxu0
          %v465 = vadd.f32 0.0, %v464
          %v466 = vpop.f32.mrb[0].mxu0
          %v467 = vpop.f32.mrb[0].mxu0
          %468 = vdwg.mxu0
          %v469 = vpack.c.bf16 %v422, %v422
          %v470 = vpack.c.bf16 %v424, %v424
          %v471 = vpack.c.bf16 %v463, %v463
          %v472 = vpack.c.bf16 %v465, %v465
          %v477 = vcombine.low %v469, %v470
          %v478 = vcombine.low %v471, %v472
          %v480 = vunpack.c.l.s4 1983009808
          %v481 = vunpack.c.0.s8 %v480
          %v482 = vlaneseq
          %v483 = vshrl.u32 %v482, 7
          %v484 = vsub.s32 %v481, %v483
          %v485 = vrot.slane %v477, %v484
          %v487 = vunpack.c.l.s4 1983009808
          %v488 = vunpack.c.0.s8 %v487
          %v489 = vlaneseq
          %v490 = vshrl.u32 %v489, 7
          %v491 = vsub.s32 %v488, %v490
          %v492 = vrot.slane %v478, %v491
          %v493 = vcombine.low %v485, %v492
          %495 = vst [vmem:[#allocation2] sm:$0xff] %v493
        $region52: #{tpu_custom_call.1} parent=39 // pred_fallthru
          _
        %v496 = vld [vmem:[%s310] sm:$0xf]
        %v497 = vld [vmem:[#allocation2] sm:$0xff]
        %v498 = vld [vmem:[%s3] sm:$0x3]
        %vm499 = vcmask 64512
        %v501 = vsel %vm499, %v498, 0
        %vm503 = vcmask 1043456
        %v505 = vsel %vm503, %v496, 0
        %507 = vmatprep.subr.bf16.mxu0 0
        %508 = vmatpush1.bf16.msra.mxu0 %v505
        %509 = vmatprep.subr.bf16.mxu0 0
        %510 = vmatpush1.bf16.msra.mxu0 0
        %511 = vmatprep.subr.bf16.mxu0 0
        %512 = vmatpush1.bf16.msra.mxu0 0
        %513 = vmatprep.subr.bf16.mxu0 0
        %514 = vmatpush1.bf16.msra.mxu0 0
        %515 = vmatprep.subr.bf16.mxu0 0
        %516 = vmatpush1.bf16.msra.mxu0 0
        %517 = vmatprep.subr.bf16.mxu0 0
        %518 = vmatpush1.bf16.msra.mxu0 0
        %519 = vmatprep.subr.bf16.mxu0 0
        %520 = vmatpush1.bf16.msra.mxu0 0
        %521 = vmatprep.subr.bf16.mxu0 0
        %522 = vmatpush1.bf16.msra.mxu0 0
        %523 = vmatprep.subr.bf16.mxu0 0
        %524 = vmatpush1.bf16.msra.mxu0 0
        %525 = vmatprep.subr.bf16.mxu0 0
        %526 = vmatpush1.bf16.msra.mxu0 0
        %527 = vmatprep.subr.bf16.mxu0 0
        %528 = vmatpush1.bf16.msra.mxu0 0
        %529 = vmatprep.subr.bf16.mxu0 0
        %530 = vmatpush1.bf16.msra.mxu0 0
        %531 = vmatprep.subr.bf16.mxu0 0
        %532 = vmatpush1.bf16.msra.mxu0 0
        %533 = vmatprep.subr.bf16.mxu0 0
        %534 = vmatpush1.bf16.msra.mxu0 0
        %535 = vmatprep.subr.bf16.mxu0 0
        %536 = vmatpush1.bf16.msra.mxu0 0
        %537 = vmatprep.subr.bf16.mxu0 0
        %538 = vmatpush1.bf16.msra.mxu0 0
        %539 = vmatprep.mubr.bf16.mxu0 0
        %540 = vmatmul.mubr.bf16.gmra.mrb[0].mxu0 %v501
        %v541 = vpop.f32.mrb[0].mxu0
        %v542 = vadd.f32 0.0, %v541
        %v543 = vpop.f32.mrb[0].mxu0
        %v544 = vpop.f32.mrb[0].mxu0
        %v545 = vpop.f32.mrb[0].mxu0
        %546 = vdwg.mxu0
        %v547 = vld [vmem:[%s4] sm:$0x3]
        %v549 = vsel %vm499, %v547, 0
        %551 = vmatprep.subr.bf16.mxu0 0
        %552 = vmatpush1.bf16.msra.mxu0 %v505
        %553 = vmatprep.subr.bf16.mxu0 0
        %554 = vmatpush1.bf16.msra.mxu0 0
        %555 = vmatprep.subr.bf16.mxu0 0
        %556 = vmatpush1.bf16.msra.mxu0 0
        %557 = vmatprep.subr.bf16.mxu0 0
        %558 = vmatpush1.bf16.msra.mxu0 0
        %559 = vmatprep.subr.bf16.mxu0 0
        %560 = vmatpush1.bf16.msra.mxu0 0
        %561 = vmatprep.subr.bf16.mxu0 0
        %562 = vmatpush1.bf16.msra.mxu0 0
        %563 = vmatprep.subr.bf16.mxu0 0
        %564 = vmatpush1.bf16.msra.mxu0 0
        %565 = vmatprep.subr.bf16.mxu0 0
        %566 = vmatpush1.bf16.msra.mxu0 0
        %567 = vmatprep.subr.bf16.mxu0 0
        %568 = vmatpush1.bf16.msra.mxu0 0
        %569 = vmatprep.subr.bf16.mxu0 0
        %570 = vmatpush1.bf16.msra.mxu0 0
        %571 = vmatprep.subr.bf16.mxu0 0
        %572 = vmatpush1.bf16.msra.mxu0 0
        %573 = vmatprep.subr.bf16.mxu0 0
        %574 = vmatpush1.bf16.msra.mxu0 0
        %575 = vmatprep.subr.bf16.mxu0 0
        %576 = vmatpush1.bf16.msra.mxu0 0
        %577 = vmatprep.subr.bf16.mxu0 0
        %578 = vmatpush1.bf16.msra.mxu0 0
        %579 = vmatprep.subr.bf16.mxu0 0
        %580 = vmatpush1.bf16.msra.mxu0 0
        %581 = vmatprep.subr.bf16.mxu0 0
        %582 = vmatpush1.bf16.msra.mxu0 0
        %583 = vmatprep.mubr.bf16.mxu0 0
        %584 = vmatmul.mubr.bf16.gmra.mrb[0].mxu0 %v549
        %v585 = vpop.f32.mrb[0].mxu0
        %v586 = vadd.f32 0.0, %v585
        %v587 = vpop.f32.mrb[0].mxu0
        %v588 = vpop.f32.mrb[0].mxu0
        %v589 = vpop.f32.mrb[0].mxu0
        %590 = vdwg.mxu0
        %v591 = vpack.c.bf16 %v542, %v542
        %592 = vxpose.xlu0.c.b16.start [1/8] %v591, 128
        %593 = vxpose.xlu0.c.b16.cont [2/8] 0, 128
        %594 = vxpose.xlu0.c.b16.cont [3/8] 0, 128
        %595 = vxpose.xlu0.c.b16.cont [4/8] 0, 128
        %596 = vxpose.xlu0.c.b16.cont [5/8] 0, 128
        %597 = vxpose.xlu0.c.b16.cont [6/8] 0, 128
        %598 = vxpose.xlu0.c.b16.cont [7/8] 0, 128
        %599 = vxpose.xlu0.c.b16.end [8/8] 0, 128
        %v600 = vpop.trf.xlu0
        %v601 = vpop.trf.xlu0
        %v602 = vpop.trf.xlu0
        %v603 = vpop.trf.xlu0
        %v604 = vpop.trf.xlu0
        %v605 = vpop.trf.xlu0
        %v606 = vpop.trf.xlu0
        %v607 = vpop.trf.xlu0
        %v609 = vcombine.high %v497, %v497
        %v611 = vunpack.c.l.s4 1983009808
        %v612 = vunpack.c.0.s8 %v611
        %v613 = vlaneseq
        %v614 = vshrl.u32 %v613, 7
        %v615 = vsub.s32 %v612, %v614
        %v616 = vrot.slane %v497, %v615
        %v618 = vunpack.c.l.s4 1983009808
        %v619 = vunpack.c.0.s8 %v618
        %v620 = vlaneseq
        %v621 = vshrl.u32 %v620, 7
        %v622 = vsub.s32 %v619, %v621
        %v623 = vrot.slane %v609, %v622
        %v624 = vcombine.high %v616, %v616
        %v625 = vcombine.high %v623, %v623
        %vm626 = vcmask 31744
        %v628 = vsel %vm626, %v600, 0
        %v631 = vsel %vm626, %v601, 0
        %v634 = vsel %vm626, %v602, 0
        %v637 = vsel %vm626, %v603, 0
        %v640 = vsel %vm626, %v604, 0
        %v643 = vsel %vm626, %v605, 0
        %v646 = vsel %vm626, %v606, 0
        %v649 = vsel %vm626, %v607, 0
        %vm651 = vcmask 1041408
        %v653 = vsel %vm651, %v616, 0
        %v656 = vsel %vm651, %v624, 0
        %v659 = vsel %vm651, %v623, 0
        %v662 = vsel %vm651, %v625, 0
        %664 = vmatprep.subr.bf16.mxu0 %v656
        %665 = vmatpush1.bf16.msra.mxu0 %v653
        %666 = vmatprep.subr.bf16.mxu0 0
        %667 = vmatpush1.bf16.msra.mxu0 0
        %668 = vmatprep.subr.bf16.mxu0 0
        %669 = vmatpush1.bf16.msra.mxu0 0
        %670 = vmatprep.subr.bf16.mxu0 0
        %671 = vmatpush1.bf16.msra.mxu0 0
        %672 = vmatprep.subr.bf16.mxu0 0
        %673 = vmatpush1.bf16.msra.mxu0 0
        %674 = vmatprep.subr.bf16.mxu0 0
        %675 = vmatpush1.bf16.msra.mxu0 0
        %676 = vmatprep.subr.bf16.mxu0 0
        %677 = vmatpush1.bf16.msra.mxu0 0
        %678 = vmatprep.subr.bf16.mxu0 0
        %679 = vmatpush1.bf16.msra.mxu0 0
        %680 = vmatprep.subr.bf16.mxu0 0
        %681 = vmatpush1.bf16.msra.mxu0 0
        %682 = vmatprep.subr.bf16.mxu0 0
        %683 = vmatpush1.bf16.msra.mxu0 0
        %684 = vmatprep.subr.bf16.mxu0 0
        %685 = vmatpush1.bf16.msra.mxu0 0
        %686 = vmatprep.subr.bf16.mxu0 0
        %687 = vmatpush1.bf16.msra.mxu0 0
        %688 = vmatprep.subr.bf16.mxu0 0
        %689 = vmatpush1.bf16.msra.mxu0 0
        %690 = vmatprep.subr.bf16.mxu0 0
        %691 = vmatpush1.bf16.msra.mxu0 0
        %692 = vmatprep.subr.bf16.mxu0 0
        %693 = vmatpush1.bf16.msra.mxu0 0
        %694 = vmatprep.subr.bf16.mxu0 0
        %695 = vmatpush1.bf16.msra.mxu0 0
        %696 = vmatprep.mubr.bf16.mxu0 0
        %697 = vmatmul.mubr.bf16.gmra.mrb[0].mxu0 %v628
        %v698 = vpop.f32.mrb[0].mxu0
        %v699 = vadd.f32 0.0, %v698
        %v700 = vpop.f32.mrb[0].mxu0
        %v701 = vadd.f32 0.0, %v700
        %v702 = vpop.f32.mrb[0].mxu0
        %v703 = vadd.f32 0.0, %v702
        %v704 = vpop.f32.mrb[0].mxu0
        %v705 = vadd.f32 0.0, %v704
        %706 = vmatprep.mubr.bf16.mxu0 0
        %707 = vmatmul.mubr.bf16.gmra.mrb[0].mxu0 %v631
        %v708 = vpop.f32.mrb[0].mxu0
        %v709 = vadd.f32 0.0, %v708
        %v710 = vpop.f32.mrb[0].mxu0
        %v711 = vadd.f32 0.0, %v710
        %v712 = vpop.f32.mrb[0].mxu0
        %v713 = vadd.f32 0.0, %v712
        %v714 = vpop.f32.mrb[0].mxu0
        %v715 = vadd.f32 0.0, %v714
        %716 = vmatprep.mubr.bf16.mxu0 0
        %717 = vmatmul.mubr.bf16.gmra.mrb[0].mxu0 %v634
        %v718 = vpop.f32.mrb[0].mxu0
        %v719 = vadd.f32 0.0, %v718
        %v720 = vpop.f32.mrb[0].mxu0
        %v721 = vadd.f32 0.0, %v720
        %v722 = vpop.f32.mrb[0].mxu0
        %v723 = vadd.f32 0.0, %v722
        %v724 = vpop.f32.mrb[0].mxu0
        %v725 = vadd.f32 0.0, %v724
        %726 = vmatprep.mubr.bf16.mxu0 0
        %727 = vmatmul.mubr.bf16.gmra.mrb[0].mxu0 %v637
        %v728 = vpop.f32.mrb[0].mxu0
        %v729 = vadd.f32 0.0, %v728
        %v730 = vpop.f32.mrb[0].mxu0
        %v731 = vadd.f32 0.0, %v730
        %v732 = vpop.f32.mrb[0].mxu0
        %v733 = vadd.f32 0.0, %v732
        %v734 = vpop.f32.mrb[0].mxu0
        %v735 = vadd.f32 0.0, %v734
        %736 = vmatprep.mubr.bf16.mxu0 0
        %737 = vmatmul.mubr.bf16.gmra.mrb[0].mxu0 %v640
        %v738 = vpop.f32.mrb[0].mxu0
        %v739 = vadd.f32 0.0, %v738
        %v740 = vpop.f32.mrb[0].mxu0
        %v741 = vadd.f32 0.0, %v740
        %v742 = vpop.f32.mrb[0].mxu0
        %v743 = vadd.f32 0.0, %v742
        %v744 = vpop.f32.mrb[0].mxu0
        %v745 = vadd.f32 0.0, %v744
        %746 = vmatprep.mubr.bf16.mxu0 0
        %747 = vmatmul.mubr.bf16.gmra.mrb[0].mxu0 %v643
        %v748 = vpop.f32.mrb[0].mxu0
        %v749 = vadd.f32 0.0, %v748
        %v750 = vpop.f32.mrb[0].mxu0
        %v751 = vadd.f32 0.0, %v750
        %v752 = vpop.f32.mrb[0].mxu0
        %v753 = vadd.f32 0.0, %v752
        %v754 = vpop.f32.mrb[0].mxu0
        %v755 = vadd.f32 0.0, %v754
        %756 = vmatprep.mubr.bf16.mxu0 0
        %757 = vmatmul.mubr.bf16.gmra.mrb[0].mxu0 %v646
        %v758 = vpop.f32.mrb[0].mxu0
        %v759 = vadd.f32 0.0, %v758
        %v760 = vpop.f32.mrb[0].mxu0
        %v761 = vadd.f32 0.0, %v760
        %v762 = vpop.f32.mrb[0].mxu0
        %v763 = vadd.f32 0.0, %v762
        %v764 = vpop.f32.mrb[0].mxu0
        %v765 = vadd.f32 0.0, %v764
        %766 = vmatprep.mubr.bf16.mxu0 0
        %767 = vmatmul.mubr.bf16.gmra.mrb[0].mxu0 %v649
        %v768 = vpop.f32.mrb[0].mxu0
        %v769 = vadd.f32 0.0, %v768
        %v770 = vpop.f32.mrb[0].mxu0
        %v771 = vadd.f32 0.0, %v770
        %v772 = vpop.f32.mrb[0].mxu0
        %v773 = vadd.f32 0.0, %v772
        %v774 = vpop.f32.mrb[0].mxu0
        %v775 = vadd.f32 0.0, %v774
        %776 = vdwg.mxu0
        %777 = vmatprep.subr.bf16.mxu0 %v662
        %778 = vmatpush1.bf16.msra.mxu0 %v659
        %779 = vmatprep.subr.bf16.mxu0 0
        %780 = vmatpush1.bf16.msra.mxu0 0
        %781 = vmatprep.subr.bf16.mxu0 0
        %782 = vmatpush1.bf16.msra.mxu0 0
        %783 = vmatprep.subr.bf16.mxu0 0
        %784 = vmatpush1.bf16.msra.mxu0 0
        %785 = vmatprep.subr.bf16.mxu0 0
        %786 = vmatpush1.bf16.msra.mxu0 0
        %787 = vmatprep.subr.bf16.mxu0 0
        %788 = vmatpush1.bf16.msra.mxu0 0
        %789 = vmatprep.subr.bf16.mxu0 0
        %790 = vmatpush1.bf16.msra.mxu0 0
        %791 = vmatprep.subr.bf16.mxu0 0
        %792 = vmatpush1.bf16.msra.mxu0 0
        %793 = vmatprep.subr.bf16.mxu0 0
        %794 = vmatpush1.bf16.msra.mxu0 0
        %795 = vmatprep.subr.bf16.mxu0 0
        %796 = vmatpush1.bf16.msra.mxu0 0
        %797 = vmatprep.subr.bf16.mxu0 0
        %798 = vmatpush1.bf16.msra.mxu0 0
        %799 = vmatprep.subr.bf16.mxu0 0
        %800 = vmatpush1.bf16.msra.mxu0 0
        %801 = vmatprep.subr.bf16.mxu0 0
        %802 = vmatpush1.bf16.msra.mxu0 0
        %803 = vmatprep.subr.bf16.mxu0 0
        %804 = vmatpush1.bf16.msra.mxu0 0
        %805 = vmatprep.subr.bf16.mxu0 0
        %806 = vmatpush1.bf16.msra.mxu0 0
        %807 = vmatprep.subr.bf16.mxu0 0
        %808 = vmatpush1.bf16.msra.mxu0 0
        %809 = vmatprep.mubr.bf16.mxu0 0
        %810 = vmatmul.mubr.bf16.gmra.mrb[0].mxu0 %v628
        %v811 = vpop.f32.mrb[0].mxu0
        %v812 = vadd.f32 0.0, %v811
        %v813 = vpop.f32.mrb[0].mxu0
        %v814 = vadd.f32 0.0, %v813
        %v815 = vpop.f32.mrb[0].mxu0
        %v816 = vadd.f32 0.0, %v815
        %v817 = vpop.f32.mrb[0].mxu0
        %v818 = vadd.f32 0.0, %v817
        %819 = vmatprep.mubr.bf16.mxu0 0
        %820 = vmatmul.mubr.bf16.gmra.mrb[0].mxu0 %v631
        %v821 = vpop.f32.mrb[0].mxu0
        %v822 = vadd.f32 0.0, %v821
        %v823 = vpop.f32.mrb[0].mxu0
        %v824 = vadd.f32 0.0, %v823
        %v825 = vpop.f32.mrb[0].mxu0
        %v826 = vadd.f32 0.0, %v825
        %v827 = vpop.f32.mrb[0].mxu0
        %v828 = vadd.f32 0.0, %v827
        %829 = vmatprep.mubr.bf16.mxu0 0
        %830 = vmatmul.mubr.bf16.gmra.mrb[0].mxu0 %v634
        %v831 = vpop.f32.mrb[0].mxu0
        %v832 = vadd.f32 0.0, %v831
        %v833 = vpop.f32.mrb[0].mxu0
        %v834 = vadd.f32 0.0, %v833
        %v835 = vpop.f32.mrb[0].mxu0
        %v836 = vadd.f32 0.0, %v835
        %v837 = vpop.f32.mrb[0].mxu0
        %v838 = vadd.f32 0.0, %v837
        %839 = vmatprep.mubr.bf16.mxu0 0
        %840 = vmatmul.mubr.bf16.gmra.mrb[0].mxu0 %v637
        %v841 = vpop.f32.mrb[0].mxu0
        %v842 = vadd.f32 0.0, %v841
        %v843 = vpop.f32.mrb[0].mxu0
        %v844 = vadd.f32 0.0, %v843
        %v845 = vpop.f32.mrb[0].mxu0
        %v846 = vadd.f32 0.0, %v845
        %v847 = vpop.f32.mrb[0].mxu0
        %v848 = vadd.f32 0.0, %v847
        %849 = vmatprep.mubr.bf16.mxu0 0
        %850 = vmatmul.mubr.bf16.gmra.mrb[0].mxu0 %v640
        %v851 = vpop.f32.mrb[0].mxu0
        %v852 = vadd.f32 0.0, %v851
        %v853 = vpop.f32.mrb[0].mxu0
        %v854 = vadd.f32 0.0, %v853
        %v855 = vpop.f32.mrb[0].mxu0
        %v856 = vadd.f32 0.0, %v855
        %v857 = vpop.f32.mrb[0].mxu0
        %v858 = vadd.f32 0.0, %v857
        %859 = vmatprep.mubr.bf16.mxu0 0
        %860 = vmatmul.mubr.bf16.gmra.mrb[0].mxu0 %v643
        %v861 = vpop.f32.mrb[0].mxu0
        %v862 = vadd.f32 0.0, %v861
        %v863 = vpop.f32.mrb[0].mxu0
        %v864 = vadd.f32 0.0, %v863
        %v865 = vpop.f32.mrb[0].mxu0
        %v866 = vadd.f32 0.0, %v865
        %v867 = vpop.f32.mrb[0].mxu0
        %v868 = vadd.f32 0.0, %v867
        %869 = vmatprep.mubr.bf16.mxu0 0
        %870 = vmatmul.mubr.bf16.gmra.mrb[0].mxu0 %v646
        %v871 = vpop.f32.mrb[0].mxu0
        %v872 = vadd.f32 0.0, %v871
        %v873 = vpop.f32.mrb[0].mxu0
        %v874 = vadd.f32 0.0, %v873
        %v875 = vpop.f32.mrb[0].mxu0
        %v876 = vadd.f32 0.0, %v875
        %v877 = vpop.f32.mrb[0].mxu0
        %v878 = vadd.f32 0.0, %v877
        %879 = vmatprep.mubr.bf16.mxu0 0
        %880 = vmatmul.mubr.bf16.gmra.mrb[0].mxu0 %v649
        %v881 = vpop.f32.mrb[0].mxu0
        %v882 = vadd.f32 0.0, %v881
        %v883 = vpop.f32.mrb[0].mxu0
        %v884 = vadd.f32 0.0, %v883
        %v885 = vpop.f32.mrb[0].mxu0
        %v886 = vadd.f32 0.0, %v885
        %v887 = vpop.f32.mrb[0].mxu0
        %v888 = vadd.f32 0.0, %v887
        %889 = vdwg.mxu0
        %v890 = vmax.f32 %v699, %v703
        %v891 = vmax.f32 %v890, %v709
        %v892 = vmax.f32 %v891, %v713
        %v893 = vmax.f32 %v892, %v719
        %v894 = vmax.f32 %v893, %v723
        %v895 = vmax.f32 %v894, %v729
        %v896 = vmax.f32 %v895, %v733
        %v897 = vmax.f32 %v896, %v739
        %v898 = vmax.f32 %v897, %v743
        %v899 = vmax.f32 %v898, %v749
        %v900 = vmax.f32 %v899, %v753
        %v901 = vmax.f32 %v900, %v759
        %v902 = vmax.f32 %v901, %v763
        %v903 = vmax.f32 %v902, %v769
        %v904 = vmax.f32 %v903, %v773
        %v905 = vrot.slane %v904, 4
        %v906 = vmax.f32 %v904, %v905
        %v907 = vrot.slane %v906, 2
        %v908 = vmax.f32 %v906, %v907
        %v909 = vrot.slane %v908, 1
        %v910 = vmax.f32 %v908, %v909
        %v911 = vmax.f32 %v701, %v705
        %v912 = vmax.f32 %v911, %v711
        %v913 = vmax.f32 %v912, %v715
        %v914 = vmax.f32 %v913, %v721
        %v915 = vmax.f32 %v914, %v725
        %v916 = vmax.f32 %v915, %v731
        %v917 = vmax.f32 %v916, %v735
        %v918 = vmax.f32 %v917, %v741
        %v919 = vmax.f32 %v918, %v745
        %v920 = vmax.f32 %v919, %v751
        %v921 = vmax.f32 %v920, %v755
        %v922 = vmax.f32 %v921, %v761
        %v923 = vmax.f32 %v922, %v765
        %v924 = vmax.f32 %v923, %v771
        %v925 = vmax.f32 %v924, %v775
        %v926 = vrot.slane %v925, 4
        %v927 = vmax.f32 %v925, %v926
        %v928 = vrot.slane %v927, 2
        %v929 = vmax.f32 %v927, %v928
        %v930 = vrot.slane %v929, 1
        %v931 = vmax.f32 %v929, %v930
        %v932 = vmax.f32 %v812, %v816
        %v933 = vmax.f32 %v932, %v822
        %v934 = vmax.f32 %v933, %v826
        %v935 = vmax.f32 %v934, %v832
        %v936 = vmax.f32 %v935, %v836
        %v937 = vmax.f32 %v936, %v842
        %v938 = vmax.f32 %v937, %v846
        %v939 = vmax.f32 %v938, %v852
        %v940 = vmax.f32 %v939, %v856
        %v941 = vmax.f32 %v940, %v862
        %v942 = vmax.f32 %v941, %v866
        %v943 = vmax.f32 %v942, %v872
        %v944 = vmax.f32 %v943, %v876
        %v945 = vmax.f32 %v944, %v882
        %v946 = vmax.f32 %v945, %v886
        %v947 = vrot.slane %v946, 4
        %v948 = vmax.f32 %v946, %v947
        %v949 = vrot.slane %v948, 2
        %v950 = vmax.f32 %v948, %v949
        %v951 = vrot.slane %v950, 1
        %v952 = vmax.f32 %v950, %v951
        %v953 = vmax.f32 %v814, %v818
        %v954 = vmax.f32 %v953, %v824
        %v955 = vmax.f32 %v954, %v828
        %v956 = vmax.f32 %v955, %v834
        %v957 = vmax.f32 %v956, %v838
        %v958 = vmax.f32 %v957, %v844
        %v959 = vmax.f32 %v958, %v848
        %v960 = vmax.f32 %v959, %v854
        %v961 = vmax.f32 %v960, %v858
        %v962 = vmax.f32 %v961, %v864
        %v963 = vmax.f32 %v962, %v868
        %v964 = vmax.f32 %v963, %v874
        %v965 = vmax.f32 %v964, %v878
        %v966 = vmax.f32 %v965, %v884
        %v967 = vmax.f32 %v966, %v888
        %v968 = vrot.slane %v967, 4
        %v969 = vmax.f32 %v967, %v968
        %v970 = vrot.slane %v969, 2
        %v971 = vmax.f32 %v969, %v970
        %v972 = vrot.slane %v971, 1
        %v973 = vmax.f32 %v971, %v972
        %v974 = vsub.f32 %v699, %v910
        %v975 = vsub.f32 %v701, %v931
        %v976 = vsub.f32 %v812, %v952
        %v977 = vsub.f32 %v814, %v973
        %v978 = vsub.f32 %v703, %v910
        %v979 = vsub.f32 %v705, %v931
        %v980 = vsub.f32 %v816, %v952
        %v981 = vsub.f32 %v818, %v973
        %v982 = vsub.f32 %v709, %v910
        %v983 = vsub.f32 %v711, %v931
        %v984 = vsub.f32 %v822, %v952
        %v985 = vsub.f32 %v824, %v973
        %v986 = vsub.f32 %v713, %v910
        %v987 = vsub.f32 %v715, %v931
        %v988 = vsub.f32 %v826, %v952
        %v989 = vsub.f32 %v828, %v973
        %v990 = vsub.f32 %v719, %v910
        %v991 = vsub.f32 %v721, %v931
        %v992 = vsub.f32 %v832, %v952
        %v993 = vsub.f32 %v834, %v973
        %v994 = vsub.f32 %v723, %v910
        %v995 = vsub.f32 %v725, %v931
        %v996 = vsub.f32 %v836, %v952
        %v997 = vsub.f32 %v838, %v973
        %v998 = vsub.f32 %v729, %v910
        %v999 = vsub.f32 %v731, %v931
        %v1000 = vsub.f32 %v842, %v952
        %v1001 = vsub.f32 %v844, %v973
        %v1002 = vsub.f32 %v733, %v910
        %v1003 = vsub.f32 %v735, %v931
        %v1004 = vsub.f32 %v846, %v952
        %v1005 = vsub.f32 %v848, %v973
        %v1006 = vsub.f32 %v739, %v910
        %v1007 = vsub.f32 %v741, %v931
        %v1008 = vsub.f32 %v852, %v952
        %v1009 = vsub.f32 %v854, %v973
        %v1010 = vsub.f32 %v743, %v910
        %v1011 = vsub.f32 %v745, %v931
        %v1012 = vsub.f32 %v856, %v952
        %v1013 = vsub.f32 %v858, %v973
        %v1014 = vsub.f32 %v749, %v910
        %v1015 = vsub.f32 %v751, %v931
        %v1016 = vsub.f32 %v862, %v952
        %v1017 = vsub.f32 %v864, %v973
        %v1018 = vsub.f32 %v753, %v910
        %v1019 = vsub.f32 %v755, %v931
        %v1020 = vsub.f32 %v866, %v952
        %v1021 = vsub.f32 %v868, %v973
        %v1022 = vsub.f32 %v759, %v910
        %v1023 = vsub.f32 %v761, %v931
        %v1024 = vsub.f32 %v872, %v952
        %v1025 = vsub.f32 %v874, %v973
        %v1026 = vsub.f32 %v763, %v910
        %v1027 = vsub.f32 %v765, %v931
        %v1028 = vsub.f32 %v876, %v952
        %v1029 = vsub.f32 %v878, %v973
        %v1030 = vsub.f32 %v769, %v910
        %v1031 = vsub.f32 %v771, %v931
        %v1032 = vsub.f32 %v882, %v952
        %v1033 = vsub.f32 %v884, %v973
        %v1034 = vsub.f32 %v773, %v910
        %v1035 = vsub.f32 %v775, %v931
        %v1036 = vsub.f32 %v886, %v952
        %v1037 = vsub.f32 %v888, %v973
        %v1038 = vmul.f32 %v974, 1.442695
        %v1039 = vpow.pop %v1038
        %v1040 = vmul.f32 %v975, 1.442695
        %v1041 = vpow.pop %v1040
        %v1042 = vmul.f32 %v976, 1.442695
        %v1043 = vpow.pop %v1042
        %v1044 = vmul.f32 %v977, 1.442695
        %v1045 = vpow.pop %v1044
        %v1046 = vmul.f32 %v978, 1.442695
        %v1047 = vpow.pop %v1046
        %v1048 = vmul.f32 %v979, 1.442695
        %v1049 = vpow.pop %v1048
        %v1050 = vmul.f32 %v980, 1.442695
        %v1051 = vpow.pop %v1050
        %v1052 = vmul.f32 %v981, 1.442695
        %v1053 = vpow.pop %v1052
        %v1054 = vmul.f32 %v982, 1.442695
        %v1055 = vpow.pop %v1054
        %v1056 = vmul.f32 %v983, 1.442695
        %v1057 = vpow.pop %v1056
        %v1058 = vmul.f32 %v984, 1.442695
        %v1059 = vpow.pop %v1058
        %v1060 = vmul.f32 %v985, 1.442695
        %v1061 = vpow.pop %v1060
        %v1062 = vmul.f32 %v986, 1.442695
        %v1063 = vpow.pop %v1062
        %v1064 = vmul.f32 %v987, 1.442695
        %v1065 = vpow.pop %v1064
        %v1066 = vmul.f32 %v988, 1.442695
        %v1067 = vpow.pop %v1066
        %v1068 = vmul.f32 %v989, 1.442695
        %v1069 = vpow.pop %v1068
        %v1070 = vmul.f32 %v990, 1.442695
        %v1071 = vpow.pop %v1070
        %v1072 = vmul.f32 %v991, 1.442695
        %v1073 = vpow.pop %v1072
        %v1074 = vmul.f32 %v992, 1.442695
        %v1075 = vpow.pop %v1074
        %v1076 = vmul.f32 %v993, 1.442695
        %v1077 = vpow.pop %v1076
        %v1078 = vmul.f32 %v994, 1.442695
        %v1079 = vpow.pop %v1078
        %v1080 = vmul.f32 %v995, 1.442695
        %v1081 = vpow.pop %v1080
        %v1082 = vmul.f32 %v996, 1.442695
        %v1083 = vpow.pop %v1082
        %v1084 = vmul.f32 %v997, 1.442695
        %v1085 = vpow.pop %v1084
        %v1086 = vmul.f32 %v998, 1.442695
        %v1087 = vpow.pop %v1086
        %v1088 = vmul.f32 %v999, 1.442695
        %v1089 = vpow.pop %v1088
        %v1090 = vmul.f32 %v1000, 1.442695
        %v1091 = vpow.pop %v1090
        %v1092 = vmul.f32 %v1001, 1.442695
        %v1093 = vpow.pop %v1092
        %v1094 = vmul.f32 %v1002, 1.442695
        %v1095 = vpow.pop %v1094
        %v1096 = vmul.f32 %v1003, 1.442695
        %v1097 = vpow.pop %v1096
        %v1098 = vmul.f32 %v1004, 1.442695
        %v1099 = vpow.pop %v1098
        %v1100 = vmul.f32 %v1005, 1.442695
        %v1101 = vpow.pop %v1100
        %v1102 = vmul.f32 %v1006, 1.442695
        %v1103 = vpow.pop %v1102
        %v1104 = vmul.f32 %v1007, 1.442695
        %v1105 = vpow.pop %v1104
        %v1106 = vmul.f32 %v1008, 1.442695
        %v1107 = vpow.pop %v1106
        %v1108 = vmul.f32 %v1009, 1.442695
        %v1109 = vpow.pop %v1108
        %v1110 = vmul.f32 %v1010, 1.442695
        %v1111 = vpow.pop %v1110
        %v1112 = vmul.f32 %v1011, 1.442695
        %v1113 = vpow.pop %v1112
        %v1114 = vmul.f32 %v1012, 1.442695
        %v1115 = vpow.pop %v1114
        %v1116 = vmul.f32 %v1013, 1.442695
        %v1117 = vpow.pop %v1116
        %v1118 = vmul.f32 %v1014, 1.442695
        %v1119 = vpow.pop %v1118
        %v1120 = vmul.f32 %v1015, 1.442695
        %v1121 = vpow.pop %v1120
        %v1122 = vmul.f32 %v1016, 1.442695
        %v1123 = vpow.pop %v1122
        %v1124 = vmul.f32 %v1017, 1.442695
        %v1125 = vpow.pop %v1124
        %v1126 = vmul.f32 %v1018, 1.442695
        %v1127 = vpow.pop %v1126
        %v1128 = vmul.f32 %v1019, 1.442695
        %v1129 = vpow.pop %v1128
        %v1130 = vmul.f32 %v1020, 1.442695
        %v1131 = vpow.pop %v1130
        %v1132 = vmul.f32 %v1021, 1.442695
        %v1133 = vpow.pop %v1132
        %v1134 = vmul.f32 %v1022, 1.442695
        %v1135 = vpow.pop %v1134
        %v1136 = vmul.f32 %v1023, 1.442695
        %v1137 = vpow.pop %v1136
        %v1138 = vmul.f32 %v1024, 1.442695
        %v1139 = vpow.pop %v1138
        %v1140 = vmul.f32 %v1025, 1.442695
        %v1141 = vpow.pop %v1140
        %v1142 = vmul.f32 %v1026, 1.442695
        %v1143 = vpow.pop %v1142
        %v1144 = vmul.f32 %v1027, 1.442695
        %v1145 = vpow.pop %v1144
        %v1146 = vmul.f32 %v1028, 1.442695
        %v1147 = vpow.pop %v1146
        %v1148 = vmul.f32 %v1029, 1.442695
        %v1149 = vpow.pop %v1148
        %v1150 = vmul.f32 %v1030, 1.442695
        %v1151 = vpow.pop %v1150
        %v1152 = vmul.f32 %v1031, 1.442695
        %v1153 = vpow.pop %v1152
        %v1154 = vmul.f32 %v1032, 1.442695
        %v1155 = vpow.pop %v1154
        %v1156 = vmul.f32 %v1033, 1.442695
        %v1157 = vpow.pop %v1156
        %v1158 = vmul.f32 %v1034, 1.442695
        %v1159 = vpow.pop %v1158
        %v1160 = vmul.f32 %v1035, 1.442695
        %v1161 = vpow.pop %v1160
        %v1162 = vmul.f32 %v1036, 1.442695
        %v1163 = vpow.pop %v1162
        %v1164 = vmul.f32 %v1037, 1.442695
        %v1165 = vpow.pop %v1164
        %v1166 = vadd.f32 %v1039, %v1047
        %v1167 = vadd.f32 %v1166, %v1055
        %v1168 = vadd.f32 %v1167, %v1063
        %v1169 = vadd.f32 %v1168, %v1071
        %v1170 = vadd.f32 %v1169, %v1079
        %v1171 = vadd.f32 %v1170, %v1087
        %v1172 = vadd.f32 %v1171, %v1095
        %v1173 = vadd.f32 %v1172, %v1103
        %v1174 = vadd.f32 %v1173, %v1111
        %v1175 = vadd.f32 %v1174, %v1119
        %v1176 = vadd.f32 %v1175, %v1127
        %v1177 = vadd.f32 %v1176, %v1135
        %v1178 = vadd.f32 %v1177, %v1143
        %v1179 = vadd.f32 %v1178, %v1151
        %v1180 = vadd.f32 %v1179, %v1159
        %v1181 = vrot.slane %v1180, 4
        %v1182 = vadd.f32 %v1180, %v1181
        %v1183 = vrot.slane %v1182, 2
        %v1184 = vadd.f32 %v1182, %v1183
        %v1185 = vrot.slane %v1184, 1
        %v1186 = vadd.f32 %v1184, %v1185
        %v1187 = vadd.f32 %v1041, %v1049
        %v1188 = vadd.f32 %v1187, %v1057
        %v1189 = vadd.f32 %v1188, %v1065
        %v1190 = vadd.f32 %v1189, %v1073
        %v1191 = vadd.f32 %v1190, %v1081
        %v1192 = vadd.f32 %v1191, %v1089
        %v1193 = vadd.f32 %v1192, %v1097
        %v1194 = vadd.f32 %v1193, %v1105
        %v1195 = vadd.f32 %v1194, %v1113
        %v1196 = vadd.f32 %v1195, %v1121
        %v1197 = vadd.f32 %v1196, %v1129
        %v1198 = vadd.f32 %v1197, %v1137
        %v1199 = vadd.f32 %v1198, %v1145
        %v1200 = vadd.f32 %v1199, %v1153
        %v1201 = vadd.f32 %v1200, %v1161
        %v1202 = vrot.slane %v1201, 4
        %v1203 = vadd.f32 %v1201, %v1202
        %v1204 = vrot.slane %v1203, 2
        %v1205 = vadd.f32 %v1203, %v1204
        %v1206 = vrot.slane %v1205, 1
        %v1207 = vadd.f32 %v1205, %v1206
        %v1208 = vadd.f32 %v1043, %v1051
        %v1209 = vadd.f32 %v1208, %v1059
        %v1210 = vadd.f32 %v1209, %v1067
        %v1211 = vadd.f32 %v1210, %v1075
        %v1212 = vadd.f32 %v1211, %v1083
        %v1213 = vadd.f32 %v1212, %v1091
        %v1214 = vadd.f32 %v1213, %v1099
        %v1215 = vadd.f32 %v1214, %v1107
        %v1216 = vadd.f32 %v1215, %v1115
        %v1217 = vadd.f32 %v1216, %v1123
        %v1218 = vadd.f32 %v1217, %v1131
        %v1219 = vadd.f32 %v1218, %v1139
        %v1220 = vadd.f32 %v1219, %v1147
        %v1221 = vadd.f32 %v1220, %v1155
        %v1222 = vadd.f32 %v1221, %v1163
        %v1223 = vrot.slane %v1222, 4
        %v1224 = vadd.f32 %v1222, %v1223
        %v1225 = vrot.slane %v1224, 2
        %v1226 = vadd.f32 %v1224, %v1225
        %v1227 = vrot.slane %v1226, 1
        %v1228 = vadd.f32 %v1226, %v1227
        %v1229 = vadd.f32 %v1045, %v1053
        %v1230 = vadd.f32 %v1229, %v1061
        %v1231 = vadd.f32 %v1230, %v1069
        %v1232 = vadd.f32 %v1231, %v1077
        %v1233 = vadd.f32 %v1232, %v1085
        %v1234 = vadd.f32 %v1233, %v1093
        %v1235 = vadd.f32 %v1234, %v1101
        %v1236 = vadd.f32 %v1235, %v1109
        %v1237 = vadd.f32 %v1236, %v1117
        %v1238 = vadd.f32 %v1237, %v1125
        %v1239 = vadd.f32 %v1238, %v1133
        %v1240 = vadd.f32 %v1239, %v1141
        %v1241 = vadd.f32 %v1240, %v1149
        %v1242 = vadd.f32 %v1241, %v1157
        %v1243 = vadd.f32 %v1242, %v1165
        %v1244 = vrot.slane %v1243, 4
        %v1245 = vadd.f32 %v1243, %v1244
        %v1246 = vrot.slane %v1245, 2
        %v1247 = vadd.f32 %v1245, %v1246
        %v1248 = vrot.slane %v1247, 1
        %v1249 = vadd.f32 %v1247, %v1248
        %v1250 = vpack.c.bf16 %v586, %v586
        %v1251 = vpack.c.bf16 %v1047, %v1039
        %v1252 = vpack.c.bf16 %v1049, %v1041
        %v1253 = vpack.c.bf16 %v1051, %v1043
        %v1254 = vpack.c.bf16 %v1053, %v1045
        %v1255 = vpack.c.bf16 %v1063, %v1055
        %v1256 = vpack.c.bf16 %v1065, %v1057
        %v1257 = vpack.c.bf16 %v1067, %v1059
        %v1258 = vpack.c.bf16 %v1069, %v1061
        %v1259 = vpack.c.bf16 %v1079, %v1071
        %v1260 = vpack.c.bf16 %v1081, %v1073
        %v1261 = vpack.c.bf16 %v1083, %v1075
        %v1262 = vpack.c.bf16 %v1085, %v1077
        %v1263 = vpack.c.bf16 %v1095, %v1087
        %v1264 = vpack.c.bf16 %v1097, %v1089
        %v1265 = vpack.c.bf16 %v1099, %v1091
        %v1266 = vpack.c.bf16 %v1101, %v1093
        %v1267 = vpack.c.bf16 %v1111, %v1103
        %v1268 = vpack.c.bf16 %v1113, %v1105
        %v1269 = vpack.c.bf16 %v1115, %v1107
        %v1270 = vpack.c.bf16 %v1117, %v1109
        %v1271 = vpack.c.bf16 %v1127, %v1119
        %v1272 = vpack.c.bf16 %v1129, %v1121
        %v1273 = vpack.c.bf16 %v1131, %v1123
        %v1274 = vpack.c.bf16 %v1133, %v1125
        %v1275 = vpack.c.bf16 %v1143, %v1135
        %v1276 = vpack.c.bf16 %v1145, %v1137
        %v1277 = vpack.c.bf16 %v1147, %v1139
        %v1278 = vpack.c.bf16 %v1149, %v1141
        %v1279 = vpack.c.bf16 %v1159, %v1151
        %v1280 = vpack.c.bf16 %v1161, %v1153
        %v1281 = vpack.c.bf16 %v1163, %v1155
        %v1282 = vpack.c.bf16 %v1165, %v1157
        %1283 = vmatprep.subr.bf16.mxu0 %v1252
        %1284 = vmatpush1.bf16.msra.mxu0 %v1251
        %1285 = vmatprep.subr.bf16.mxu0 %v1256
        %1286 = vmatpush1.bf16.msra.mxu0 %v1255
        %1287 = vmatprep.subr.bf16.mxu0 %v1260
        %1288 = vmatpush1.bf16.msra.mxu0 %v1259
        %1289 = vmatprep.subr.bf16.mxu0 %v1264
        %1290 = vmatpush1.bf16.msra.mxu0 %v1263
        %1291 = vmatprep.subr.bf16.mxu0 %v1268
        %1292 = vmatpush1.bf16.msra.mxu0 %v1267
        %1293 = vmatprep.subr.bf16.mxu0 %v1272
        %1294 = vmatpush1.bf16.msra.mxu0 %v1271
        %1295 = vmatprep.subr.bf16.mxu0 %v1276
        %1296 = vmatpush1.bf16.msra.mxu0 %v1275
        %1297 = vmatprep.subr.bf16.mxu0 %v1280
        %1298 = vmatpush1.bf16.msra.mxu0 %v1279
        %1299 = vmatprep.subr.bf16.mxu0 0
        %1300 = vmatpush1.bf16.msra.mxu0 0
        %1301 = vmatprep.subr.bf16.mxu0 0
        %1302 = vmatpush1.bf16.msra.mxu0 0
        %1303 = vmatprep.subr.bf16.mxu0 0
        %1304 = vmatpush1.bf16.msra.mxu0 0
        %1305 = vmatprep.subr.bf16.mxu0 0
        %1306 = vmatpush1.bf16.msra.mxu0 0
        %1307 = vmatprep.subr.bf16.mxu0 0
        %1308 = vmatpush1.bf16.msra.mxu0 0
        %1309 = vmatprep.subr.bf16.mxu0 0
        %1310 = vmatpush1.bf16.msra.mxu0 0
        %1311 = vmatprep.subr.bf16.mxu0 0
        %1312 = vmatpush1.bf16.msra.mxu0 0
        %1313 = vmatprep.subr.bf16.mxu0 0
        %1314 = vmatpush1.bf16.msra.mxu0 0
        %1315 = vmatprep.mubr.bf16.mxu0 0
        %1316 = vmatmul.mubr.bf16.gmra.mrb[0].mxu0 %v1250
        %v1317 = vpop.f32.mrb[0].mxu0
        %v1318 = vadd.f32 0.0, %v1317
        %v1319 = vpop.f32.mrb[0].mxu0
        %v1320 = vadd.f32 0.0, %v1319
        %v1321 = vpop.f32.mrb[0].mxu0
        %v1322 = vpop.f32.mrb[0].mxu0
        %1323 = vdwg.mxu0
        %1324 = vmatprep.subr.bf16.mxu0 %v1254
        %1325 = vmatpush1.bf16.msra.mxu0 %v1253
        %1326 = vmatprep.subr.bf16.mxu0 %v1258
        %1327 = vmatpush1.bf16.msra.mxu0 %v1257
        %1328 = vmatprep.subr.bf16.mxu0 %v1262
        %1329 = vmatpush1.bf16.msra.mxu0 %v1261
        %1330 = vmatprep.subr.bf16.mxu0 %v1266
        %1331 = vmatpush1.bf16.msra.mxu0 %v1265
        %1332 = vmatprep.subr.bf16.mxu0 %v1270
        %1333 = vmatpush1.bf16.msra.mxu0 %v1269
        %1334 = vmatprep.subr.bf16.mxu0 %v1274
        %1335 = vmatpush1.bf16.msra.mxu0 %v1273
        %1336 = vmatprep.subr.bf16.mxu0 %v1278
        %1337 = vmatpush1.bf16.msra.mxu0 %v1277
        %1338 = vmatprep.subr.bf16.mxu0 %v1282
        %1339 = vmatpush1.bf16.msra.mxu0 %v1281
        %1340 = vmatprep.subr.bf16.mxu0 0
        %1341 = vmatpush1.bf16.msra.mxu0 0
        %1342 = vmatprep.subr.bf16.mxu0 0
        %1343 = vmatpush1.bf16.msra.mxu0 0
        %1344 = vmatprep.subr.bf16.mxu0 0
        %1345 = vmatpush1.bf16.msra.mxu0 0
        %1346 = vmatprep.subr.bf16.mxu0 0
        %1347 = vmatpush1.bf16.msra.mxu0 0
        %1348 = vmatprep.subr.bf16.mxu0 0
        %1349 = vmatpush1.bf16.msra.mxu0 0
        %1350 = vmatprep.subr.bf16.mxu0 0
        %1351 = vmatpush1.bf16.msra.mxu0 0
        %1352 = vmatprep.subr.bf16.mxu0 0
        %1353 = vmatpush1.bf16.msra.mxu0 0
        %1354 = vmatprep.subr.bf16.mxu0 0
        %1355 = vmatpush1.bf16.msra.mxu0 0
        %1356 = vmatprep.mubr.bf16.mxu0 0
        %1357 = vmatmul.mubr.bf16.gmra.mrb[0].mxu0 %v1250
        %v1358 = vpop.f32.mrb[0].mxu0
        %v1359 = vadd.f32 0.0, %v1358
        %v1360 = vpop.f32.mrb[0].mxu0
        %v1361 = vadd.f32 0.0, %v1360
        %v1362 = vpop.f32.mrb[0].mxu0
        %v1363 = vpop.f32.mrb[0].mxu0
        %1364 = vdwg.mxu0
        %v1365 = vrcp.pop %v1186
        %v1366 = vrcp.pop %v1207
        %v1367 = vrcp.pop %v1228
        %v1368 = vrcp.pop %v1249
        %v1369 = vmul.f32 %v1318, %v1365
        %v1370 = vmul.f32 %v1320, %v1366
        %v1371 = vmul.f32 %v1359, %v1367
        %v1372 = vmul.f32 %v1361, %v1368
        %v1373 = vpack.c.bf16 %v1369, %v1369
        %v1374 = vpack.c.bf16 %v1370, %v1370
        %v1375 = vpack.c.bf16 %v1371, %v1371
        %v1376 = vpack.c.bf16 %v1372, %v1372
        %v1381 = vcombine.low %v1373, %v1374
        %v1382 = vcombine.low %v1375, %v1376
        %v1384 = vunpack.c.l.s4 1983009808
        %v1385 = vunpack.c.0.s8 %v1384
        %v1386 = vlaneseq
        %v1387 = vshrl.u32 %v1386, 7
        %v1388 = vsub.s32 %v1385, %v1387
        %v1389 = vrot.slane %v1381, %v1388
        %v1391 = vunpack.c.l.s4 1983009808
        %v1392 = vunpack.c.0.s8 %v1391
        %v1393 = vlaneseq
        %v1394 = vshrl.u32 %v1393, 7
        %v1395 = vsub.s32 %v1392, %v1394
        %v1396 = vrot.slane %v1382, %v1395
        %v1397 = vcombine.low %v1389, %v1396
        %1399 = vst [vmem:[%s341] sm:$0xff] %v1397
        %1400 = vst [vmem:[%s348] sm:$0x3] %v1250
        %s1401 = sand.u32 %s180, 1
        %s1402 = scalar_lea.sflag [#allocation5], %s1401
        %s1403 = sand.u32 %s180, 1
        %s1404 = smul.addr %s1403, 8
        %s1405 = scalar_lea.vmem [#allocation8], %s1404
        %s1406 = sand.u32 %s208, 1
        %s1407 = scalar_lea.sflag [#allocation10], %s1406
        %s1408 = sand.u32 %s208, 1
        %s1409 = smul.addr %s1408, 2
        %s1410 = scalar_lea.vmem [#allocation9], %s1409
        // Predicated region
        $region53: #{tpu_custom_call.1} parent=39 // pred_check
          %p1411 = pneg %p190
        $region54: #{tpu_custom_call.1} parent=39 // pred_check_branch
          %1413 = sbr.rel (%p1411) target = $region56
        $region55: #{tpu_custom_call.1} parent=39 // pred_region
          %s1414 = sadd.s32 %s37, %s36
          %s1415 = smul.u32 4, %s1414
          %s1417 = ssub.s32 128, 128
          %1418 = vsyncadd %s1402, %s1417
          %s1419 = smul.addr %s35, 16
          %s1420 = sadd.s32 %s1415, %s1419
          %s1421 = smul.addr %s1420, 32
          %s1422 = scalar_lea.hbm %s5, %s1421
          %s1424 = sshll.u32 %s1405, 4
          %s1425 = int_to_ptr.vmem [resolvable:$true] %s1424
          %1427 = dma.vmem_to_hbm [thread:$0]  %s1425, 128, %s1422, %s1402
        $region56: #{tpu_custom_call.1} parent=39 // pred_fallthru
          _
        // Predicated region
        $region57: #{tpu_custom_call.1} parent=39 // pred_check
          %p1428 = pneg %p218
        $region58: #{tpu_custom_call.1} parent=39 // pred_check_branch
          %1430 = sbr.rel (%p1428) target = $region60
        $region59: #{tpu_custom_call.1} parent=39 // pred_region
          %s1432 = ssub.s32 32, 32
          %1433 = vsyncadd %s1407, %s1432
          %s1434 = smul.addr %s35, 4
          %s1435 = sadd.s32 %s37, %s1434
          %s1436 = smul.addr %s1435, 32
          %s1437 = scalar_lea.hbm %s6, %s1436
          %s1439 = sshll.u32 %s1410, 4
          %s1440 = int_to_ptr.vmem [resolvable:$true] %s1439
          %1442 = dma.vmem_to_hbm [thread:$0]  %s1440, 32, %s1437, %s1407
        $region60: #{tpu_custom_call.1} parent=39 // pred_fallthru
          _
      $region40: #{tpu_custom_call.1} parent=5 // pred_fallthru
        _
      %p1443 = scmp.le.s32.totalorder 2, %s25
      // Predicated region
      $region61: #{tpu_custom_call.1} parent=5 // pred_check
        %p1444 = pneg %p1443
      $region62: #{tpu_custom_call.1} parent=5 // pred_check_branch
        %1446 = sbr.rel (%p1444) target = $region64
      $region63: #{tpu_custom_call.1} parent=5 // pred_region
        %s1447 = ssub.s32 %s25, 2
        // Predicated region
        $region65: #{tpu_custom_call.1} parent=63 // pred_check
          %p1448 = pneg %p196
        $region66: #{tpu_custom_call.1} parent=63 // pred_check_branch
          %1450 = sbr.rel (%p1448) target = $region68
        $region67: #{tpu_custom_call.1} parent=63 // pred_region
          %s1451 = sand.u32 %s181, 1
          %s1452 = scalar_lea.sflag [#allocation5], %s1451
          %s1453 = sand.u32 %s181, 1
          %s1454 = smul.addr %s1453, 8
          %s1455 = scalar_lea.vmem [#allocation8], %s1454
          %1456 = dma.done %s1452, 128
        $region68: #{tpu_custom_call.1} parent=63 // pred_fallthru
          _
        // Predicated region
        $region69: #{tpu_custom_call.1} parent=63 // pred_check
          %p1457 = pneg %p224
        $region70: #{tpu_custom_call.1} parent=63 // pred_check_branch
          %1459 = sbr.rel (%p1457) target = $region72
        $region71: #{tpu_custom_call.1} parent=63 // pred_region
          %s1460 = sand.u32 %s209, 1
          %s1461 = scalar_lea.sflag [#allocation10], %s1460
          %s1462 = sand.u32 %s209, 1
          %s1463 = smul.addr %s1462, 2
          %s1464 = scalar_lea.vmem [#allocation9], %s1463
          %1465 = dma.done %s1461, 32
        $region72: #{tpu_custom_call.1} parent=63 // pred_fallthru
          _
      $region64: #{tpu_custom_call.1} parent=5 // pred_fallthru
        _
    $region6: #{tpu_custom_call.1} parent=1 // loop_footer
      %s29 = sadd.s32 1, %s25
    $region7: #{tpu_custom_call.1} parent=1 // loop_footer_branch
      %24 = sbr.rel target = $region3
    $region8: #{tpu_custom_call.1} parent=1 // loop_exit
      _
    %1466 = vsyncpa [#allocation4], 1
    %s1467 = scalar_lea.sflag [#allocation4], 1
    %1468 = vsyncpa %s1467, 1
    %1469 = vsyncpa [#allocation7], 1
    %s1470 = scalar_lea.sflag [#allocation7], 1
    %1471 = vsyncpa %s1470, 1
    %1472 = vsyncpa [#allocation5], 1
    %s1473 = scalar_lea.sflag [#allocation5], 1
    %1474 = vsyncpa %s1473, 1
    %1475 = vsyncpa [#allocation10], 1
    %s1476 = scalar_lea.sflag [#allocation10], 1
    %1477 = vsyncpa %s1476, 1

</llo_original>
